<compile_context>
chip_gen: v5e
topology: v5e:2x2
jax: 0.10.0
libtpu: 0.0.40
codegen_flags: <defaults>
</compile_context>

<pallas_src>
import jax
import jax.numpy as jnp
from jax import lax
from jax.experimental import pallas as pl
from jax.experimental.pallas import tpu as pltpu


def _swiglu_kernel(x_ref, w12_ref, w3_ref, o_ref, acc_ref):
    """One (token-tile i, hidden-tile j) grid step.

    x_ref  : (tm, dim)       token tile (resident across the j axis)
    w12_ref: (2*tn, dim)     [w1 tile ; w2 tile] stacked, PyTorch layout
    w3_ref : (dim, tn)       w3 tile, PyTorch layout [dim, hidden]
    o_ref  : (tm, dim)       output tile (revisited across j)
    acc_ref: (tm, dim) f32   accumulator scratch
    """
    j = pl.program_id(1)

    @pl.when(j == 0)
    def _():
        acc_ref[...] = jnp.zeros_like(acc_ref)

    x = x_ref[...]
    tn = w12_ref.shape[0] // 2

    # Contract the `dim` axis of both operands (A . B^T, MXU-native; weights
    # keep their PyTorch layout so nothing is transposed per call).
    dn = (((1,), (1,)), ((), ()))

    # Single fused gate/up matmul: (tm, dim) x (2*tn, dim)^T -> (tm, 2*tn).
    h12 = lax.dot_general(x, w12_ref[...], dimension_numbers=dn,
                          preferred_element_type=jnp.float32)
    h1 = h12[:, :tn]          # w1(x) tile (slice offset is a multiple of 128)
    h2 = h12[:, tn:]          # w2(x) tile

    # Numerically-safe SiLU in f32: exp argument <= 0 (never overflows), exp
    # runs on the EUP; one exact reciprocal + select completes the sigmoid.
    z = jnp.exp(-jnp.abs(h1))
    inv = 1.0 / (1.0 + z)
    sig = jnp.where(h1 >= 0, inv, z * inv)
    gated = h1 * sig * h2

    # acc += gated @ w3^T : contract the hidden tile on both sides.
    acc_ref[...] += lax.dot_general(gated.astype(w3_ref.dtype), w3_ref[...],
                                    dimension_numbers=dn,
                                    preferred_element_type=jnp.float32)

    @pl.when(j == pl.num_programs(1) - 1)
    def _():
        o_ref[...] = acc_ref[...].astype(o_ref.dtype)


def _round_up(x, n):
    return ((x + n - 1) // n) * n


def _vmem_capacity_bytes():
    """Physical VMEM per TensorCore (64 MiB on v7x, 128 MiB on v5e/v6e)."""
    try:
        info = pltpu.get_tpu_info()
        v = getattr(info, "vmem_capacity_bytes", None)
        if v:
            return int(v)
    except Exception:
        pass
    try:
        if "v7" in jax.devices()[0].device_kind.lower():
            return 64 * 1024 * 1024
    except Exception:
        pass
    return 128 * 1024 * 1024


def _block_spec(shape, index_map, buffers=None):
    """BlockSpec with optional explicit buffer depth (graceful fallback if the
    pipeline_mode kwarg is unavailable in this JAX build)."""
    if buffers is None:
        return pl.BlockSpec(shape, index_map)
    try:
        return pl.BlockSpec(shape, index_map, pipeline_mode=pl.Buffered(buffers))
    except TypeError:
        return pl.BlockSpec(shape, index_map)


def swiglu_pallas(x, w1, w2, w3, *, tm=None, tn=None, vmem_limit_bytes=None):
    """x: [batch, seq, dim]; w1, w2: [hidden, dim]; w3: [dim, hidden].

    Pass bf16 x / weights in production (MXU bf16 peak, f32 accumulation);
    f32 operands are also supported (multi-pass MXU, used for parity checks).
    """
    b, s, dim = x.shape
    hidden, dim_w = w1.shape
    assert dim_w == dim and w2.shape == (hidden, dim) and w3.shape == (dim, hidden)

    m = b * s
    x2d = x.reshape(m, dim)

    vmem = _vmem_capacity_bytes()
    small_vmem = vmem <= 64 * 1024 * 1024      # v7x-class: 64 MiB VMEM, 2 TC/chip
    if tm is None:
        # tm sets the weight-stream arithmetic intensity (~tm FLOP per weight
        # byte): 1024 clears the v5e/v6e bf16 roofline knee, 512 clears v7x's
        # (~310 FLOP/B) while fitting its 64 MiB VMEM with single-buffered I/O.
        tm = 512 if small_vmem else 1024
    if tn is None:
        tn = 512
    if vmem_limit_bytes is None:
        vmem_limit_bytes = (56 if small_vmem else 100) * 1024 * 1024

    # Clamp / align tiles: multiples of 128 keep every MXU generation fed and
    # satisfy the (8,128) BlockSpec constraint.
    m128 = _round_up(m, 128)
    tm = min(tm, m128)
    if small_vmem and m128 >= 256:
        # Dual-TensorCore chip: guarantee >= 2 token tiles so the "parallel"
        # grid axis shards across both cores.
        tm = min(tm, max(128, _round_up((m128 + 1) // 2, 128)))
    tn = min(tn, _round_up(hidden, 128))

    m_pad = _round_up(m, tm)
    h_pad = _round_up(hidden, tn)

    if m_pad != m:        # zero token rows contribute nothing; sliced off below
        x2d = jnp.pad(x2d, ((0, m_pad - m), (0, 0)))
    if h_pad != hidden:   # zero hidden rows/cols contribute exactly zero
        w1 = jnp.pad(w1, ((0, h_pad - hidden), (0, 0)))
        w2 = jnp.pad(w2, ((0, h_pad - hidden), (0, 0)))
        w3 = jnp.pad(w3, ((0, 0), (0, h_pad - hidden)))

    # Stack w1/w2 at hidden-tile granularity: block j of the stacked array is
    # [w1 tile j ; w2 tile j], so each grid step is one weight DMA stream and
    # one fused gate/up matmul.  (In a real model do this once at load time.)
    n_h = h_pad // tn
    w12 = jnp.stack(
        [w1.reshape(n_h, tn, dim), w2.reshape(n_h, tn, dim)], axis=1
    ).reshape(2 * h_pad, dim)

    grid = (m_pad // tm, n_h)
    m_tiles = m_pad // tm
    itemsize = x2d.dtype.itemsize

    cost = pl.CostEstimate(
        flops=6 * m_pad * dim * h_pad,            # three matmuls
        transcendentals=m_pad * h_pad,            # one exp per gate element
        bytes_accessed=(
            x2d.size * itemsize                   # activations in
            + m_pad * dim * itemsize              # output
            # weights are re-streamed once per token tile
            + m_tiles * (w12.size * w12.dtype.itemsize
                         + w3.size * w3.dtype.itemsize)
        ),
    )

    out2d = pl.pallas_call(
        _swiglu_kernel,
        out_shape=jax.ShapeDtypeStruct((m_pad, dim), x.dtype),
        grid_spec=pltpu.PrefetchScalarGridSpec(
            num_scalar_prefetch=0,
            grid=grid,
            in_specs=[
                # x tile is j-invariant -> single buffer (frees VMEM for big tm)
                _block_spec((tm, dim), lambda i, j: (i, 0), buffers=1),
                # weight streams keep the default double buffer
                _block_spec((2 * tn, dim), lambda i, j: (j, 0)),
                _block_spec((dim, tn), lambda i, j: (0, j)),
            ],
            # output tile is also j-invariant (revisited) -> single buffer
            out_specs=_block_spec((tm, dim), lambda i, j: (i, 0), buffers=1),
            scratch_shapes=[pltpu.VMEM((tm, dim), jnp.float32)],
        ),
        compiler_params=pltpu.CompilerParams(
            dimension_semantics=("parallel", "arbitrary"),
            vmem_limit_bytes=vmem_limit_bytes,
        ),
        cost_estimate=cost,
    )(x2d, w12, w3)

    return out2d[:m].reshape(b, s, dim)


def swiglu_ref(x, w1, w2, w3):
    """Pure-JAX reference matching the PyTorch module exactly."""
    h1 = jnp.einsum("bsd,hd->bsh", x, w1)
    h2 = jnp.einsum("bsd,hd->bsh", x, w2)
    g = h1 * jax.nn.sigmoid(h1) * h2
    return jnp.einsum("bsh,dh->bsd", g, w3)


if __name__ == "__main__":
    batch, seq, dim, hidden = 2, 8, 128, 256

    key = jax.random.PRNGKey(0)
    kx, k1, k2, k3 = jax.random.split(key, 4)

    x = jax.random.normal(kx, (batch, seq, dim), dtype=jnp.float32)
    # Deterministic init mimicking nn.Linear default (uniform +/- 1/sqrt(fan_in)).
    w1 = jax.random.uniform(k1, (hidden, dim), jnp.float32,
                            -1.0 / dim ** 0.5, 1.0 / dim ** 0.5)
    w2 = jax.random.uniform(k2, (hidden, dim), jnp.float32,
                            -1.0 / dim ** 0.5, 1.0 / dim ** 0.5)
    w3 = jax.random.uniform(k3, (dim, hidden), jnp.float32,
                            -1.0 / hidden ** 0.5, 1.0 / hidden ** 0.5)

    # f32 parity check against the pure-JAX reference.
    out = swiglu_pallas(x, w1, w2, w3)
    jax.block_until_ready(out)
    ref = swiglu_ref(x, w1, w2, w3)
    assert out.shape == (batch, seq, dim)
    assert jnp.allclose(out, ref, atol=1e-2, rtol=1e-2), "mismatch vs reference"

    # bf16 production-path smoke run (bf16 operands, f32 accumulation).
    out_bf16 = swiglu_pallas(x.astype(jnp.bfloat16), w1.astype(jnp.bfloat16),
                             w2.astype(jnp.bfloat16), w3.astype(jnp.bfloat16))
    jax.block_until_ready(out_bf16)
    assert out_bf16.shape == (batch, seq, dim)
    assert bool(jnp.all(jnp.isfinite(out_bf16.astype(jnp.float32))))

    print("KERNEL_OK")
</pallas_src>

<mosaic_0001>
module attributes {stable_mosaic.version = 11 : i64} {
  func.func @_swiglu_kernel(%arg0: i32, %arg1: i32, %arg2: memref<128x128xf32, #tpu.memory_space<vmem>>, %arg3: memref<512x128xf32, #tpu.memory_space<vmem>>, %arg4: memref<128x256xf32, #tpu.memory_space<vmem>>, %arg5: memref<128x128xf32, #tpu.memory_space<vmem>>, %arg6: memref<128x128xf32, #tpu.memory_space<vmem>>) attributes {dimension_semantics = [#tpu.dimension_semantics<parallel>, #tpu.dimension_semantics<arbitrary>], iteration_bounds = array<i64: 1, 1>, scalar_prefetch = 0 : i64, scratch_operands = 1 : i64, tpu.core_type = #tpu.core_type<tc>, window_params = [{pipeline_mode = #tpu.pipeline_mode<synchronous>, transform_indices = @transform_0, window_bounds = array<i64: 128, 128>}, {transform_indices = @transform_1, window_bounds = array<i64: 512, 128>}, {transform_indices = @transform_2, window_bounds = array<i64: 128, 256>}, {pipeline_mode = #tpu.pipeline_mode<synchronous>, transform_indices = @transform_3, window_bounds = array<i64: 128, 128>}]} {
    %c0_i32 = arith.constant 0 : i32
    %0 = arith.cmpi eq, %arg1, %c0_i32 : i32
    %1 = arith.extui %0 : i1 to i32
    %c0_i32_0 = arith.constant 0 : i32
    %2 = arith.cmpi ne, %1, %c0_i32_0 : i32
    scf.if %2 {
      %cst_17 = arith.constant 0.000000e+00 : f32
      %30 = vector.broadcast %cst_17 : f32 to vector<128x128xf32>
      %c0_18 = arith.constant 0 : index
      %c0_19 = arith.constant 0 : index
      %31 = vector.load %arg6[%c0_18, %c0_19] : memref<128x128xf32, #tpu.memory_space<vmem>>, vector<128x128xf32>
      tpu.vector_store %arg6[%c0_18, %c0_19], %30 {strides = array<i32>} : memref<128x128xf32, #tpu.memory_space<vmem>>, vector<128x128xf32>,
    } else {
    }
    %c0 = arith.constant 0 : index
    %c0_1 = arith.constant 0 : index
    %3 = vector.load %arg2[%c0, %c0_1] : memref<128x128xf32, #tpu.memory_space<vmem>>, vector<128x128xf32>
    %c0_2 = arith.constant 0 : index
    %c0_3 = arith.constant 0 : index
    %4 = vector.load %arg3[%c0_2, %c0_3] : memref<512x128xf32, #tpu.memory_space<vmem>>, vector<512x128xf32>
    %cst = arith.constant dense<0.000000e+00> : vector<128x512xf32>
    %5 = tpu.matmul %3, %4, %cst {dimension_numbers = #tpu.dot_dimension_numbers<[1], [1], [0], [0], [0, 0, 1, 0], [], []>} : vector<128x128xf32>, vector<512x128xf32>, vector<128x512xf32> -> vector<128x512xf32>
    %6 = vector.extract_strided_slice %5 {offsets = [0, 0], sizes = [128, 256], strides = [1, 1]} : vector<128x512xf32> to vector<128x256xf32>
    %7 = vector.extract_strided_slice %5 {offsets = [0, 256], sizes = [128, 256], strides = [1, 1]} : vector<128x512xf32> to vector<128x256xf32>
    %8 = math.absf %6 : vector<128x256xf32>
    %cst_4 = arith.constant 0.000000e+00 : f32
    %9 = vector.broadcast %cst_4 : f32 to vector<128x256xf32>
    %10 = arith.subf %9, %8 : vector<128x256xf32>
    %11 = math.exp %10 : vector<128x256xf32>
    %cst_5 = arith.constant 1.000000e+00 : f32
    %12 = vector.broadcast %cst_5 : f32 to vector<128x256xf32>
    %13 = arith.addf %12, %11 : vector<128x256xf32>
    %cst_6 = arith.constant 1.000000e+00 : f32
    %14 = vector.broadcast %cst_6 : f32 to vector<128x256xf32>
    %15 = arith.divf %14, %13 : vector<128x256xf32>
    %cst_7 = arith.constant 0.000000e+00 : f32
    %16 = vector.broadcast %cst_7 : f32 to vector<128x256xf32>
    %17 = arith.cmpf oge, %6, %16 : vector<128x256xf32>
    %18 = arith.mulf %11, %15 : vector<128x256xf32>
    %19 = arith.select %17, %15, %18 : vector<128x256xi1>, vector<128x256xf32>
    %20 = arith.mulf %6, %19 : vector<128x256xf32>
    %21 = arith.mulf %20, %7 : vector<128x256xf32>
    %c0_8 = arith.constant 0 : index
    %c0_9 = arith.constant 0 : index
    %22 = vector.load %arg6[%c0_8, %c0_9] : memref<128x128xf32, #tpu.memory_space<vmem>>, vector<128x128xf32>
    %c0_10 = arith.constant 0 : index
    %c0_11 = arith.constant 0 : index
    %23 = vector.load %arg4[%c0_10, %c0_11] : memref<128x256xf32, #tpu.memory_space<vmem>>, vector<128x256xf32>
    %cst_12 = arith.constant dense<0.000000e+00> : vector<128x128xf32>
    %24 = tpu.matmul %21, %23, %cst_12 {dimension_numbers = #tpu.dot_dimension_numbers<[1], [1], [0], [0], [0, 0, 1, 0], [], []>} : vector<128x256xf32>, vector<128x256xf32>, vector<128x128xf32> -> vector<128x128xf32>
    %25 = arith.addf %22, %24 : vector<128x128xf32>
    %c0_13 = arith.constant 0 : index
    %c0_14 = arith.constant 0 : index
    %26 = vector.load %arg6[%c0_13, %c0_14] : memref<128x128xf32, #tpu.memory_space<vmem>>, vector<128x128xf32>
    tpu.vector_store %arg6[%c0_13, %c0_14], %25 {strides = array<i32>} : memref<128x128xf32, #tpu.memory_space<vmem>>, vector<128x128xf32>,
    %c0_i32_15 = arith.constant 0 : i32
    %27 = arith.cmpi eq, %arg1, %c0_i32_15 : i32
    %28 = arith.extui %27 : i1 to i32
    %c0_i32_16 = arith.constant 0 : i32
    %29 = arith.cmpi ne, %28, %c0_i32_16 : i32
    scf.if %29 {
      %c0_17 = arith.constant 0 : index
      %c0_18 = arith.constant 0 : index
      %30 = vector.load %arg6[%c0_17, %c0_18] : memref<128x128xf32, #tpu.memory_space<vmem>>, vector<128x128xf32>
      %c0_19 = arith.constant 0 : index
      %c0_20 = arith.constant 0 : index
      %31 = vector.load %arg5[%c0_19, %c0_20] : memref<128x128xf32, #tpu.memory_space<vmem>>, vector<128x128xf32>
      tpu.vector_store %arg5[%c0_19, %c0_20], %30 {strides = array<i32>} : memref<128x128xf32, #tpu.memory_space<vmem>>, vector<128x128xf32>,
    } else {
    }
    return
  }
  func.func @transform_0(%arg0: i32, %arg1: i32) -> (i32, i32) {
    %c0_i32 = arith.constant 0 : i32
    %c0_i32_0 = arith.constant 0 : i32
    return %arg0, %c0_i32 : i32, i32
  }
  func.func @transform_1(%arg0: i32, %arg1: i32) -> (i32, i32) {
    %c0_i32 = arith.constant 0 : i32
    %c0_i32_0 = arith.constant 0 : i32
    return %arg1, %c0_i32 : i32, i32
  }
  func.func @transform_2(%arg0: i32, %arg1: i32) -> (i32, i32) {
    %c0_i32 = arith.constant 0 : i32
    %c0_i32_0 = arith.constant 0 : i32
    return %c0_i32, %arg1 : i32, i32
  }
  func.func @transform_3(%arg0: i32, %arg1: i32) -> (i32, i32) {
    %c0_i32 = arith.constant 0 : i32
    %c0_i32_0 = arith.constant 0 : i32
    return %arg0, %c0_i32 : i32, i32
  }
}

</mosaic_0001>

<llo_original>
// kernel: tpu_custom_call.1
$region0: #{tpu_custom_call.1}
  #allocation0 [shape = 'u32[]', space=smem, size = 0x4, offset = 0x4, fixed_abs, tag = 'smem constant byte address 0x4 - core index']
  #allocation1 [shape = 'u32[72,128]{1,0:T(1,128)}', space=vmem, size = 0x9000, scoped, tag = 'internal scratch']
  #allocation2 [shape = 'f32[128,128]{1,0:T(8,128)}', space=vmem, size = 0x10000, scoped, tag = 'scratch operand']
  %s0 = inlined_call_operand.hbm [shape: f32[128,128], index: 0, kind: input, shape index: {}]
  %s1 = inlined_call_operand.hbm [shape: f32[512,128], index: 1, kind: input, shape index: {}]
  %s2 = inlined_call_operand.hbm [shape: f32[128,256], index: 2, kind: input, shape index: {}]
  %s3 = inlined_call_operand.hbm [shape: f32[128,128], index: 3, kind: output, shape index: {}]
  %s4 = sld [smem:[#allocation0]]
  $region42: #{tpu_custom_call.1} parent=0
    _
  %s6 = ssub.s32 1, %s4
  %s7 = scalar_select 0, %s6, %s4
  $region1: #{tpu_custom_call.1} parent=0
    #allocation3 [shape = 'u8[65536]{0}', space=vmem, size = 0x10000, scoped, tag = 'input window, operand 0, single buffered']
    #allocation4 [shape = 's32[1]{0}', space=sflag, size = 0x4, scoped, tag = 'scoped memory for tpu_custom_call.1']
    #allocation5 [shape = 's32[1]{0}', space=sflag, size = 0x4, scoped, tag = 'scoped memory for tpu_custom_call.1']
    #allocation6 [shape = 'u8[262144]{0}', space=vmem, size = 0x40000, scoped, tag = 'input window, operand 1, single buffered']
    #allocation7 [shape = 's32[1]{0}', space=sflag, size = 0x4, scoped, tag = 'scoped memory for tpu_custom_call.1']
    #allocation8 [shape = 'u8[131072]{0}', space=vmem, size = 0x20000, scoped, tag = 'input window, operand 2, single buffered']
    #allocation9 [shape = 'u8[65536]{0}', space=vmem, size = 0x10000, scoped, tag = 'output window, operand 0, single buffered']
    %8 = vsyncpa [#allocation4], 0
    %9 = vsyncpa [#allocation7], 0
    %10 = vsyncpa [#allocation5], 0
    // Predicated region
    $region2: #{tpu_custom_call.1} parent=1 // pred_check
      _
    $region3: #{tpu_custom_call.1} parent=1 // pred_check_branch
      %12 = sbr.rel (0) target = $region5
    $region4: #{tpu_custom_call.1} parent=1 // pred_region
      %14 = vsyncadd [#allocation4], 0
      %s15 = sshll.u32 %s0, 4
      %s16 = int_to_ptr.hbm [resolvable:$true] %s15
      %s17 = sshll.u32 [#allocation3], 4
      %s18 = int_to_ptr.vmem [resolvable:$true] %s17
      %23 = dma.hbm_to_vmem [thread:$0]  %s16, 2048, %s18, [#allocation4], 128, 128, 8
    $region5: #{tpu_custom_call.1} parent=1 // pred_fallthru
      _
    // Predicated region
    $region6: #{tpu_custom_call.1} parent=1 // pred_check
      _
    $region7: #{tpu_custom_call.1} parent=1 // pred_check_branch
      %25 = sbr.rel (0) target = $region9
    $region8: #{tpu_custom_call.1} parent=1 // pred_region
      %27 = vsyncadd [#allocation7], 0
      %s28 = sshll.u32 %s1, 4
      %s29 = int_to_ptr.hbm [resolvable:$true] %s28
      %s30 = sshll.u32 [#allocation6], 4
      %s31 = int_to_ptr.vmem [resolvable:$true] %s30
      %36 = dma.hbm_to_vmem [thread:$0]  %s29, 8192, %s31, [#allocation7], 128, 128, 8
    $region9: #{tpu_custom_call.1} parent=1 // pred_fallthru
      _
    // Predicated region
    $region10: #{tpu_custom_call.1} parent=1 // pred_check
      _
    $region11: #{tpu_custom_call.1} parent=1 // pred_check_branch
      %38 = sbr.rel (0) target = $region13
    $region12: #{tpu_custom_call.1} parent=1 // pred_region
      %40 = vsyncadd [#allocation7], 0
      %s41 = sshll.u32 %s2, 4
      %s42 = int_to_ptr.hbm [resolvable:$true] %s41
      %s43 = sshll.u32 [#allocation8], 4
      %s44 = int_to_ptr.vmem [resolvable:$true] %s43
      %49 = dma.hbm_to_vmem [thread:$0]  %s42, 4096, %s44, [#allocation7], 256, 256, 16
    $region13: #{tpu_custom_call.1} parent=1 // pred_fallthru
      _
    // Predicated region
    $region14: #{tpu_custom_call.1} parent=1 // pred_check
      _
    $region15: #{tpu_custom_call.1} parent=1 // pred_check_branch
      %51 = sbr.rel (0) target = $region17
    $region16: #{tpu_custom_call.1} parent=1 // pred_region
      %53 = dma.done [#allocation4], 2048
    $region17: #{tpu_custom_call.1} parent=1 // pred_fallthru
      _
    // Predicated region
    $region18: #{tpu_custom_call.1} parent=1 // pred_check
      _
    $region19: #{tpu_custom_call.1} parent=1 // pred_check_branch
      %55 = sbr.rel (0) target = $region21
    $region20: #{tpu_custom_call.1} parent=1 // pred_region
      %57 = dma.done [#allocation7], 8192
    $region21: #{tpu_custom_call.1} parent=1 // pred_fallthru
      _
    // Predicated region
    $region22: #{tpu_custom_call.1} parent=1 // pred_check
      _
    $region23: #{tpu_custom_call.1} parent=1 // pred_check_branch
      %59 = sbr.rel (0) target = $region25
    $region24: #{tpu_custom_call.1} parent=1 // pred_region
      %61 = dma.done [#allocation7], 4096
    $region25: #{tpu_custom_call.1} parent=1 // pred_fallthru
      _
    %p62 = scmp.eq.s32.totalorder 0, 0
    // Predicated region
    $region26: #{tpu_custom_call.1} parent=1 // pred_check
      %p63 = pneg %p62
    $region27: #{tpu_custom_call.1} parent=1 // pred_check_branch
      %65 = sbr.rel (%p63) target = $region29
    $region28: #{tpu_custom_call.1} parent=1 // pred_region
      %66 = vst [vmem:[#allocation2] sm:$0xff] 0.0
      %67 = vst [vmem:[#allocation2 + $0x8] sm:$0xff] 0.0
      %68 = vst [vmem:[#allocation2 + $0x10] sm:$0xff] 0.0
      %69 = vst [vmem:[#allocation2 + $0x18] sm:$0xff] 0.0
      %70 = vst [vmem:[#allocation2 + $0x20] sm:$0xff] 0.0
      %71 = vst [vmem:[#allocation2 + $0x28] sm:$0xff] 0.0
      %72 = vst [vmem:[#allocation2 + $0x30] sm:$0xff] 0.0
      %73 = vst [vmem:[#allocation2 + $0x38] sm:$0xff] 0.0
      %74 = vst [vmem:[#allocation2 + $0x40] sm:$0xff] 0.0
      %75 = vst [vmem:[#allocation2 + $0x48] sm:$0xff] 0.0
      %76 = vst [vmem:[#allocation2 + $0x50] sm:$0xff] 0.0
      %77 = vst [vmem:[#allocation2 + $0x58] sm:$0xff] 0.0
      %78 = vst [vmem:[#allocation2 + $0x60] sm:$0xff] 0.0
      %79 = vst [vmem:[#allocation2 + $0x68] sm:$0xff] 0.0
      %80 = vst [vmem:[#allocation2 + $0x70] sm:$0xff] 0.0
      %81 = vst [vmem:[#allocation2 + $0x78] sm:$0xff] 0.0
    $region29: #{tpu_custom_call.1} parent=1 // pred_fallthru
      _
    %v82 = vld [vmem:[#allocation3] sm:$0xff]
    %v83 = vld [vmem:[#allocation3 + $0x8] sm:$0xff]
    %v84 = vld [vmem:[#allocation3 + $0x10] sm:$0xff]
    %v85 = vld [vmem:[#allocation3 + $0x18] sm:$0xff]
    %v86 = vld [vmem:[#allocation3 + $0x20] sm:$0xff]
    %v87 = vld [vmem:[#allocation3 + $0x28] sm:$0xff]
    %v88 = vld [vmem:[#allocation3 + $0x30] sm:$0xff]
    %v89 = vld [vmem:[#allocation3 + $0x38] sm:$0xff]
    %v90 = vld [vmem:[#allocation3 + $0x40] sm:$0xff]
    %v91 = vld [vmem:[#allocation3 + $0x48] sm:$0xff]
    %v92 = vld [vmem:[#allocation3 + $0x50] sm:$0xff]
    %v93 = vld [vmem:[#allocation3 + $0x58] sm:$0xff]
    %v94 = vld [vmem:[#allocation3 + $0x60] sm:$0xff]
    %v95 = vld [vmem:[#allocation3 + $0x68] sm:$0xff]
    %v96 = vld [vmem:[#allocation3 + $0x70] sm:$0xff]
    %v97 = vld [vmem:[#allocation3 + $0x78] sm:$0xff]
    %v98 = vld [vmem:[#allocation6] sm:$0xff]
    %v99 = vld [vmem:[#allocation6 + $0x8] sm:$0xff]
    %v100 = vld [vmem:[#allocation6 + $0x10] sm:$0xff]
    %v101 = vld [vmem:[#allocation6 + $0x18] sm:$0xff]
    %v102 = vld [vmem:[#allocation6 + $0x20] sm:$0xff]
    %v103 = vld [vmem:[#allocation6 + $0x28] sm:$0xff]
    %v104 = vld [vmem:[#allocation6 + $0x30] sm:$0xff]
    %v105 = vld [vmem:[#allocation6 + $0x38] sm:$0xff]
    %v106 = vld [vmem:[#allocation6 + $0x40] sm:$0xff]
    %v107 = vld [vmem:[#allocation6 + $0x48] sm:$0xff]
    %v108 = vld [vmem:[#allocation6 + $0x50] sm:$0xff]
    %v109 = vld [vmem:[#allocation6 + $0x58] sm:$0xff]
    %v110 = vld [vmem:[#allocation6 + $0x60] sm:$0xff]
    %v111 = vld [vmem:[#allocation6 + $0x68] sm:$0xff]
    %v112 = vld [vmem:[#allocation6 + $0x70] sm:$0xff]
    %v113 = vld [vmem:[#allocation6 + $0x78] sm:$0xff]
    %v114 = vld [vmem:[#allocation6 + $0x80] sm:$0xff]
    %v115 = vld [vmem:[#allocation6 + $0x88] sm:$0xff]
    %v116 = vld [vmem:[#allocation6 + $0x90] sm:$0xff]
    %v117 = vld [vmem:[#allocation6 + $0x98] sm:$0xff]
    %v118 = vld [vmem:[#allocation6 + $0xa0] sm:$0xff]
    %v119 = vld [vmem:[#allocation6 + $0xa8] sm:$0xff]
    %v120 = vld [vmem:[#allocation6 + $0xb0] sm:$0xff]
    %v121 = vld [vmem:[#allocation6 + $0xb8] sm:$0xff]
    %v122 = vld [vmem:[#allocation6 + $0xc0] sm:$0xff]
    %v123 = vld [vmem:[#allocation6 + $0xc8] sm:$0xff]
    %v124 = vld [vmem:[#allocation6 + $0xd0] sm:$0xff]
    %v125 = vld [vmem:[#allocation6 + $0xd8] sm:$0xff]
    %v126 = vld [vmem:[#allocation6 + $0xe0] sm:$0xff]
    %v127 = vld [vmem:[#allocation6 + $0xe8] sm:$0xff]
    %v128 = vld [vmem:[#allocation6 + $0xf0] sm:$0xff]
    %v129 = vld [vmem:[#allocation6 + $0xf8] sm:$0xff]
    %v130 = vld [vmem:[#allocation6 + $0x100] sm:$0xff]
    %v131 = vld [vmem:[#allocation6 + $0x108] sm:$0xff]
    %v132 = vld [vmem:[#allocation6 + $0x110] sm:$0xff]
    %v133 = vld [vmem:[#allocation6 + $0x118] sm:$0xff]
    %v134 = vld [vmem:[#allocation6 + $0x120] sm:$0xff]
    %v135 = vld [vmem:[#allocation6 + $0x128] sm:$0xff]
    %v136 = vld [vmem:[#allocation6 + $0x130] sm:$0xff]
    %v137 = vld [vmem:[#allocation6 + $0x138] sm:$0xff]
    %v138 = vld [vmem:[#allocation6 + $0x140] sm:$0xff]
    %v139 = vld [vmem:[#allocation6 + $0x148] sm:$0xff]
    %v140 = vld [vmem:[#allocation6 + $0x150] sm:$0xff]
    %v141 = vld [vmem:[#allocation6 + $0x158] sm:$0xff]
    %v142 = vld [vmem:[#allocation6 + $0x160] sm:$0xff]
    %v143 = vld [vmem:[#allocation6 + $0x168] sm:$0xff]
    %v144 = vld [vmem:[#allocation6 + $0x170] sm:$0xff]
    %v145 = vld [vmem:[#allocation6 + $0x178] sm:$0xff]
    %v146 = vld [vmem:[#allocation6 + $0x180] sm:$0xff]
    %v147 = vld [vmem:[#allocation6 + $0x188] sm:$0xff]
    %v148 = vld [vmem:[#allocation6 + $0x190] sm:$0xff]
    %v149 = vld [vmem:[#allocation6 + $0x198] sm:$0xff]
    %v150 = vld [vmem:[#allocation6 + $0x1a0] sm:$0xff]
    %v151 = vld [vmem:[#allocation6 + $0x1a8] sm:$0xff]
    %v152 = vld [vmem:[#allocation6 + $0x1b0] sm:$0xff]
    %v153 = vld [vmem:[#allocation6 + $0x1b8] sm:$0xff]
    %v154 = vld [vmem:[#allocation6 + $0x1c0] sm:$0xff]
    %v155 = vld [vmem:[#allocation6 + $0x1c8] sm:$0xff]
    %v156 = vld [vmem:[#allocation6 + $0x1d0] sm:$0xff]
    %v157 = vld [vmem:[#allocation6 + $0x1d8] sm:$0xff]
    %v158 = vld [vmem:[#allocation6 + $0x1e0] sm:$0xff]
    %v159 = vld [vmem:[#allocation6 + $0x1e8] sm:$0xff]
    %v160 = vld [vmem:[#allocation6 + $0x1f0] sm:$0xff]
    %v161 = vld [vmem:[#allocation6 + $0x1f8] sm:$0xff]
    %162 = vmatpush.xpose.msra.mxu0 %v113
    %163 = vmatpush.xpose.msra.mxu0 %v112
    %164 = vmatpush.xpose.msra.mxu0 %v111
    %165 = vmatpush.xpose.msra.mxu0 %v110
    %166 = vmatpush.xpose.msra.mxu0 %v109
    %167 = vmatpush.xpose.msra.mxu0 %v108
    %168 = vmatpush.xpose.msra.mxu0 %v107
    %169 = vmatpush.xpose.msra.mxu0 %v106
    %170 = vmatpush.xpose.msra.mxu0 %v105
    %171 = vmatpush.xpose.msra.mxu0 %v104
    %172 = vmatpush.xpose.msra.mxu0 %v103
    %173 = vmatpush.xpose.msra.mxu0 %v102
    %174 = vmatpush.xpose.msra.mxu0 %v101
    %175 = vmatpush.xpose.msra.mxu0 %v100
    %176 = vmatpush.xpose.msra.mxu0 %v99
    %177 = vmatpush.xpose.msra.mxu0 %v98
    %178 = vmatmul.f32.gmra.mxu0 %v82
    %v179 = vpop.f32.mrf.mxu0
    %v180 = vadd.f32 0.0, %v179
    %181 = vmatmul.f32.gmra.mxu0 %v83
    %v182 = vpop.f32.mrf.mxu0
    %v183 = vadd.f32 0.0, %v182
    %184 = vmatmul.f32.gmra.mxu0 %v84
    %v185 = vpop.f32.mrf.mxu0
    %v186 = vadd.f32 0.0, %v185
    %187 = vmatmul.f32.gmra.mxu0 %v85
    %v188 = vpop.f32.mrf.mxu0
    %v189 = vadd.f32 0.0, %v188
    %190 = vmatmul.f32.gmra.mxu0 %v86
    %v191 = vpop.f32.mrf.mxu0
    %v192 = vadd.f32 0.0, %v191
    %193 = vmatmul.f32.gmra.mxu0 %v87
    %v194 = vpop.f32.mrf.mxu0
    %v195 = vadd.f32 0.0, %v194
    %196 = vmatmul.f32.gmra.mxu0 %v88
    %v197 = vpop.f32.mrf.mxu0
    %v198 = vadd.f32 0.0, %v197
    %199 = vmatmul.f32.gmra.mxu0 %v89
    %v200 = vpop.f32.mrf.mxu0
    %v201 = vadd.f32 0.0, %v200
    %202 = vmatmul.f32.gmra.mxu0 %v90
    %v203 = vpop.f32.mrf.mxu0
    %v204 = vadd.f32 0.0, %v203
    %205 = vmatmul.f32.gmra.mxu0 %v91
    %v206 = vpop.f32.mrf.mxu0
    %v207 = vadd.f32 0.0, %v206
    %208 = vmatmul.f32.gmra.mxu0 %v92
    %v209 = vpop.f32.mrf.mxu0
    %v210 = vadd.f32 0.0, %v209
    %211 = vmatmul.f32.gmra.mxu0 %v93
    %v212 = vpop.f32.mrf.mxu0
    %v213 = vadd.f32 0.0, %v212
    %214 = vmatmul.f32.gmra.mxu0 %v94
    %v215 = vpop.f32.mrf.mxu0
    %v216 = vadd.f32 0.0, %v215
    %217 = vmatmul.f32.gmra.mxu0 %v95
    %v218 = vpop.f32.mrf.mxu0
    %v219 = vadd.f32 0.0, %v218
    %220 = vmatmul.f32.gmra.mxu0 %v96
    %v221 = vpop.f32.mrf.mxu0
    %v222 = vadd.f32 0.0, %v221
    %223 = vmatmul.f32.gmra.mxu0 %v97
    %v224 = vpop.f32.mrf.mxu0
    %v225 = vadd.f32 0.0, %v224
    %226 = vdwg.mxu0
    %227 = vmatpush.xpose.msra.mxu0 %v129
    %228 = vmatpush.xpose.msra.mxu0 %v128
    %229 = vmatpush.xpose.msra.mxu0 %v127
    %230 = vmatpush.xpose.msra.mxu0 %v126
    %231 = vmatpush.xpose.msra.mxu0 %v125
    %232 = vmatpush.xpose.msra.mxu0 %v124
    %233 = vmatpush.xpose.msra.mxu0 %v123
    %234 = vmatpush.xpose.msra.mxu0 %v122
    %235 = vmatpush.xpose.msra.mxu0 %v121
    %236 = vmatpush.xpose.msra.mxu0 %v120
    %237 = vmatpush.xpose.msra.mxu0 %v119
    %238 = vmatpush.xpose.msra.mxu0 %v118
    %239 = vmatpush.xpose.msra.mxu0 %v117
    %240 = vmatpush.xpose.msra.mxu0 %v116
    %241 = vmatpush.xpose.msra.mxu0 %v115
    %242 = vmatpush.xpose.msra.mxu0 %v114
    %243 = vmatmul.f32.gmra.mxu0 %v82
    %v244 = vpop.f32.mrf.mxu0
    %v245 = vadd.f32 0.0, %v244
    %246 = vmatmul.f32.gmra.mxu0 %v83
    %v247 = vpop.f32.mrf.mxu0
    %v248 = vadd.f32 0.0, %v247
    %249 = vmatmul.f32.gmra.mxu0 %v84
    %v250 = vpop.f32.mrf.mxu0
    %v251 = vadd.f32 0.0, %v250
    %252 = vmatmul.f32.gmra.mxu0 %v85
    %v253 = vpop.f32.mrf.mxu0
    %v254 = vadd.f32 0.0, %v253
    %255 = vmatmul.f32.gmra.mxu0 %v86
    %v256 = vpop.f32.mrf.mxu0
    %v257 = vadd.f32 0.0, %v256
    %258 = vmatmul.f32.gmra.mxu0 %v87
    %v259 = vpop.f32.mrf.mxu0
    %v260 = vadd.f32 0.0, %v259
    %261 = vmatmul.f32.gmra.mxu0 %v88
    %v262 = vpop.f32.mrf.mxu0
    %v263 = vadd.f32 0.0, %v262
    %264 = vmatmul.f32.gmra.mxu0 %v89
    %v265 = vpop.f32.mrf.mxu0
    %v266 = vadd.f32 0.0, %v265
    %267 = vmatmul.f32.gmra.mxu0 %v90
    %v268 = vpop.f32.mrf.mxu0
    %v269 = vadd.f32 0.0, %v268
    %270 = vmatmul.f32.gmra.mxu0 %v91
    %v271 = vpop.f32.mrf.mxu0
    %v272 = vadd.f32 0.0, %v271
    %273 = vmatmul.f32.gmra.mxu0 %v92
    %v274 = vpop.f32.mrf.mxu0
    %v275 = vadd.f32 0.0, %v274
    %276 = vmatmul.f32.gmra.mxu0 %v93
    %v277 = vpop.f32.mrf.mxu0
    %v278 = vadd.f32 0.0, %v277
    %279 = vmatmul.f32.gmra.mxu0 %v94
    %v280 = vpop.f32.mrf.mxu0
    %v281 = vadd.f32 0.0, %v280
    %282 = vmatmul.f32.gmra.mxu0 %v95
    %v283 = vpop.f32.mrf.mxu0
    %v284 = vadd.f32 0.0, %v283
    %285 = vmatmul.f32.gmra.mxu0 %v96
    %v286 = vpop.f32.mrf.mxu0
    %v287 = vadd.f32 0.0, %v286
    %288 = vmatmul.f32.gmra.mxu0 %v97
    %v289 = vpop.f32.mrf.mxu0
    %v290 = vadd.f32 0.0, %v289
    %291 = vdwg.mxu0
    %292 = vmatpush.xpose.msra.mxu0 %v145
    %293 = vmatpush.xpose.msra.mxu0 %v144
    %294 = vmatpush.xpose.msra.mxu0 %v143
    %295 = vmatpush.xpose.msra.mxu0 %v142
    %296 = vmatpush.xpose.msra.mxu0 %v141
    %297 = vmatpush.xpose.msra.mxu0 %v140
    %298 = vmatpush.xpose.msra.mxu0 %v139
    %299 = vmatpush.xpose.msra.mxu0 %v138
    %300 = vmatpush.xpose.msra.mxu0 %v137
    %301 = vmatpush.xpose.msra.mxu0 %v136
    %302 = vmatpush.xpose.msra.mxu0 %v135
    %303 = vmatpush.xpose.msra.mxu0 %v134
    %304 = vmatpush.xpose.msra.mxu0 %v133
    %305 = vmatpush.xpose.msra.mxu0 %v132
    %306 = vmatpush.xpose.msra.mxu0 %v131
    %307 = vmatpush.xpose.msra.mxu0 %v130
    %308 = vmatmul.f32.gmra.mxu0 %v82
    %v309 = vpop.f32.mrf.mxu0
    %v310 = vadd.f32 0.0, %v309
    %311 = vmatmul.f32.gmra.mxu0 %v83
    %v312 = vpop.f32.mrf.mxu0
    %v313 = vadd.f32 0.0, %v312
    %314 = vmatmul.f32.gmra.mxu0 %v84
    %v315 = vpop.f32.mrf.mxu0
    %v316 = vadd.f32 0.0, %v315
    %317 = vmatmul.f32.gmra.mxu0 %v85
    %v318 = vpop.f32.mrf.mxu0
    %v319 = vadd.f32 0.0, %v318
    %320 = vmatmul.f32.gmra.mxu0 %v86
    %v321 = vpop.f32.mrf.mxu0
    %v322 = vadd.f32 0.0, %v321
    %323 = vmatmul.f32.gmra.mxu0 %v87
    %v324 = vpop.f32.mrf.mxu0
    %v325 = vadd.f32 0.0, %v324
    %326 = vmatmul.f32.gmra.mxu0 %v88
    %v327 = vpop.f32.mrf.mxu0
    %v328 = vadd.f32 0.0, %v327
    %329 = vmatmul.f32.gmra.mxu0 %v89
    %v330 = vpop.f32.mrf.mxu0
    %v331 = vadd.f32 0.0, %v330
    %332 = vmatmul.f32.gmra.mxu0 %v90
    %v333 = vpop.f32.mrf.mxu0
    %v334 = vadd.f32 0.0, %v333
    %335 = vmatmul.f32.gmra.mxu0 %v91
    %v336 = vpop.f32.mrf.mxu0
    %v337 = vadd.f32 0.0, %v336
    %338 = vmatmul.f32.gmra.mxu0 %v92
    %v339 = vpop.f32.mrf.mxu0
    %v340 = vadd.f32 0.0, %v339
    %341 = vmatmul.f32.gmra.mxu0 %v93
    %v342 = vpop.f32.mrf.mxu0
    %v343 = vadd.f32 0.0, %v342
    %344 = vmatmul.f32.gmra.mxu0 %v94
    %v345 = vpop.f32.mrf.mxu0
    %v346 = vadd.f32 0.0, %v345
    %347 = vmatmul.f32.gmra.mxu0 %v95
    %v348 = vpop.f32.mrf.mxu0
    %v349 = vadd.f32 0.0, %v348
    %350 = vmatmul.f32.gmra.mxu0 %v96
    %v351 = vpop.f32.mrf.mxu0
    %v352 = vadd.f32 0.0, %v351
    %353 = vmatmul.f32.gmra.mxu0 %v97
    %v354 = vpop.f32.mrf.mxu0
    %v355 = vadd.f32 0.0, %v354
    %356 = vdwg.mxu0
    %357 = vmatpush.xpose.msra.mxu0 %v161
    %358 = vmatpush.xpose.msra.mxu0 %v160
    %359 = vmatpush.xpose.msra.mxu0 %v159
    %360 = vmatpush.xpose.msra.mxu0 %v158
    %361 = vmatpush.xpose.msra.mxu0 %v157
    %362 = vmatpush.xpose.msra.mxu0 %v156
    %363 = vmatpush.xpose.msra.mxu0 %v155
    %364 = vmatpush.xpose.msra.mxu0 %v154
    %365 = vmatpush.xpose.msra.mxu0 %v153
    %366 = vmatpush.xpose.msra.mxu0 %v152
    %367 = vmatpush.xpose.msra.mxu0 %v151
    %368 = vmatpush.xpose.msra.mxu0 %v150
    %369 = vmatpush.xpose.msra.mxu0 %v149
    %370 = vmatpush.xpose.msra.mxu0 %v148
    %371 = vmatpush.xpose.msra.mxu0 %v147
    %372 = vmatpush.xpose.msra.mxu0 %v146
    %373 = vmatmul.f32.gmra.mxu0 %v82
    %v374 = vpop.f32.mrf.mxu0
    %v375 = vadd.f32 0.0, %v374
    %376 = vmatmul.f32.gmra.mxu0 %v83
    %v377 = vpop.f32.mrf.mxu0
    %v378 = vadd.f32 0.0, %v377
    %379 = vmatmul.f32.gmra.mxu0 %v84
    %v380 = vpop.f32.mrf.mxu0
    %v381 = vadd.f32 0.0, %v380
    %382 = vmatmul.f32.gmra.mxu0 %v85
    %v383 = vpop.f32.mrf.mxu0
    %v384 = vadd.f32 0.0, %v383
    %385 = vmatmul.f32.gmra.mxu0 %v86
    %v386 = vpop.f32.mrf.mxu0
    %v387 = vadd.f32 0.0, %v386
    %388 = vmatmul.f32.gmra.mxu0 %v87
    %v389 = vpop.f32.mrf.mxu0
    %v390 = vadd.f32 0.0, %v389
    %391 = vmatmul.f32.gmra.mxu0 %v88
    %v392 = vpop.f32.mrf.mxu0
    %v393 = vadd.f32 0.0, %v392
    %394 = vmatmul.f32.gmra.mxu0 %v89
    %v395 = vpop.f32.mrf.mxu0
    %v396 = vadd.f32 0.0, %v395
    %397 = vmatmul.f32.gmra.mxu0 %v90
    %v398 = vpop.f32.mrf.mxu0
    %v399 = vadd.f32 0.0, %v398
    %400 = vmatmul.f32.gmra.mxu0 %v91
    %v401 = vpop.f32.mrf.mxu0
    %v402 = vadd.f32 0.0, %v401
    %403 = vmatmul.f32.gmra.mxu0 %v92
    %v404 = vpop.f32.mrf.mxu0
    %v405 = vadd.f32 0.0, %v404
    %406 = vmatmul.f32.gmra.mxu0 %v93
    %v407 = vpop.f32.mrf.mxu0
    %v408 = vadd.f32 0.0, %v407
    %409 = vmatmul.f32.gmra.mxu0 %v94
    %v410 = vpop.f32.mrf.mxu0
    %v411 = vadd.f32 0.0, %v410
    %412 = vmatmul.f32.gmra.mxu0 %v95
    %v413 = vpop.f32.mrf.mxu0
    %v414 = vadd.f32 0.0, %v413
    %415 = vmatmul.f32.gmra.mxu0 %v96
    %v416 = vpop.f32.mrf.mxu0
    %v417 = vadd.f32 0.0, %v416
    %418 = vmatmul.f32.gmra.mxu0 %v97
    %v419 = vpop.f32.mrf.mxu0
    %v420 = vadd.f32 0.0, %v419
    %421 = vdwg.mxu0
    %v422 = vand.u32 2147483647, %v180
    %v423 = vand.u32 2147483647, %v245
    %v424 = vand.u32 2147483647, %v183
    %v425 = vand.u32 2147483647, %v248
    %v426 = vand.u32 2147483647, %v186
    %v427 = vand.u32 2147483647, %v251
    %v428 = vand.u32 2147483647, %v189
    %v429 = vand.u32 2147483647, %v254
    %v430 = vand.u32 2147483647, %v192
    %v431 = vand.u32 2147483647, %v257
    %v432 = vand.u32 2147483647, %v195
    %v433 = vand.u32 2147483647, %v260
    %v434 = vand.u32 2147483647, %v198
    %v435 = vand.u32 2147483647, %v263
    %v436 = vand.u32 2147483647, %v201
    %v437 = vand.u32 2147483647, %v266
    %v438 = vand.u32 2147483647, %v204
    %v439 = vand.u32 2147483647, %v269
    %v440 = vand.u32 2147483647, %v207
    %v441 = vand.u32 2147483647, %v272
    %v442 = vand.u32 2147483647, %v210
    %v443 = vand.u32 2147483647, %v275
    %v444 = vand.u32 2147483647, %v213
    %v445 = vand.u32 2147483647, %v278
    %v446 = vand.u32 2147483647, %v216
    %v447 = vand.u32 2147483647, %v281
    %v448 = vand.u32 2147483647, %v219
    %v449 = vand.u32 2147483647, %v284
    %v450 = vand.u32 2147483647, %v222
    %v451 = vand.u32 2147483647, %v287
    %v452 = vand.u32 2147483647, %v225
    %v453 = vand.u32 2147483647, %v290
    %v454 = vsub.f32 0.0, %v422
    %v455 = vsub.f32 0.0, %v423
    %v456 = vsub.f32 0.0, %v424
    %v457 = vsub.f32 0.0, %v425
    %v458 = vsub.f32 0.0, %v426
    %v459 = vsub.f32 0.0, %v427
    %v460 = vsub.f32 0.0, %v428
    %v461 = vsub.f32 0.0, %v429
    %v462 = vsub.f32 0.0, %v430
    %v463 = vsub.f32 0.0, %v431
    %v464 = vsub.f32 0.0, %v432
    %v465 = vsub.f32 0.0, %v433
    %v466 = vsub.f32 0.0, %v434
    %v467 = vsub.f32 0.0, %v435
    %v468 = vsub.f32 0.0, %v436
    %v469 = vsub.f32 0.0, %v437
    %v470 = vsub.f32 0.0, %v438
    %v471 = vsub.f32 0.0, %v439
    %v472 = vsub.f32 0.0, %v440
    %v473 = vsub.f32 0.0, %v441
    %v474 = vsub.f32 0.0, %v442
    %v475 = vsub.f32 0.0, %v443
    %v476 = vsub.f32 0.0, %v444
    %v477 = vsub.f32 0.0, %v445
    %v478 = vsub.f32 0.0, %v446
    %v479 = vsub.f32 0.0, %v447
    %v480 = vsub.f32 0.0, %v448
    %v481 = vsub.f32 0.0, %v449
    %v482 = vsub.f32 0.0, %v450
    %v483 = vsub.f32 0.0, %v451
    %v484 = vsub.f32 0.0, %v452
    %v485 = vsub.f32 0.0, %v453
    %v486 = vmul.f32 %v454, 1.442695
    %v487 = vpow.pop %v486
    %v488 = vmul.f32 %v455, 1.442695
    %v489 = vpow.pop %v488
    %v490 = vmul.f32 %v456, 1.442695
    %v491 = vpow.pop %v490
    %v492 = vmul.f32 %v457, 1.442695
    %v493 = vpow.pop %v492
    %v494 = vmul.f32 %v458, 1.442695
    %v495 = vpow.pop %v494
    %v496 = vmul.f32 %v459, 1.442695
    %v497 = vpow.pop %v496
    %v498 = vmul.f32 %v460, 1.442695
    %v499 = vpow.pop %v498
    %v500 = vmul.f32 %v461, 1.442695
    %v501 = vpow.pop %v500
    %v502 = vmul.f32 %v462, 1.442695
    %v503 = vpow.pop %v502
    %v504 = vmul.f32 %v463, 1.442695
    %v505 = vpow.pop %v504
    %v506 = vmul.f32 %v464, 1.442695
    %v507 = vpow.pop %v506
    %v508 = vmul.f32 %v465, 1.442695
    %v509 = vpow.pop %v508
    %v510 = vmul.f32 %v466, 1.442695
    %v511 = vpow.pop %v510
    %v512 = vmul.f32 %v467, 1.442695
    %v513 = vpow.pop %v512
    %v514 = vmul.f32 %v468, 1.442695
    %v515 = vpow.pop %v514
    %v516 = vmul.f32 %v469, 1.442695
    %v517 = vpow.pop %v516
    %v518 = vmul.f32 %v470, 1.442695
    %v519 = vpow.pop %v518
    %v520 = vmul.f32 %v471, 1.442695
    %v521 = vpow.pop %v520
    %v522 = vmul.f32 %v472, 1.442695
    %v523 = vpow.pop %v522
    %v524 = vmul.f32 %v473, 1.442695
    %v525 = vpow.pop %v524
    %v526 = vmul.f32 %v474, 1.442695
    %v527 = vpow.pop %v526
    %v528 = vmul.f32 %v475, 1.442695
    %v529 = vpow.pop %v528
    %v530 = vmul.f32 %v476, 1.442695
    %v531 = vpow.pop %v530
    %v532 = vmul.f32 %v477, 1.442695
    %v533 = vpow.pop %v532
    %v534 = vmul.f32 %v478, 1.442695
    %v535 = vpow.pop %v534
    %v536 = vmul.f32 %v479, 1.442695
    %v537 = vpow.pop %v536
    %v538 = vmul.f32 %v480, 1.442695
    %v539 = vpow.pop %v538
    %v540 = vmul.f32 %v481, 1.442695
    %v541 = vpow.pop %v540
    %v542 = vmul.f32 %v482, 1.442695
    %v543 = vpow.pop %v542
    %v544 = vmul.f32 %v483, 1.442695
    %v545 = vpow.pop %v544
    %v546 = vmul.f32 %v484, 1.442695
    %v547 = vpow.pop %v546
    %v548 = vmul.f32 %v485, 1.442695
    %v549 = vpow.pop %v548
    %v550 = vadd.f32 %v487, 1.0
    %v551 = vadd.f32 %v489, 1.0
    %v552 = vadd.f32 %v491, 1.0
    %v553 = vadd.f32 %v493, 1.0
    %v554 = vadd.f32 %v495, 1.0
    %v555 = vadd.f32 %v497, 1.0
    %v556 = vadd.f32 %v499, 1.0
    %v557 = vadd.f32 %v501, 1.0
    %v558 = vadd.f32 %v503, 1.0
    %v559 = vadd.f32 %v505, 1.0
    %v560 = vadd.f32 %v507, 1.0
    %v561 = vadd.f32 %v509, 1.0
    %v562 = vadd.f32 %v511, 1.0
    %v563 = vadd.f32 %v513, 1.0
    %v564 = vadd.f32 %v515, 1.0
    %v565 = vadd.f32 %v517, 1.0
    %v566 = vadd.f32 %v519, 1.0
    %v567 = vadd.f32 %v521, 1.0
    %v568 = vadd.f32 %v523, 1.0
    %v569 = vadd.f32 %v525, 1.0
    %v570 = vadd.f32 %v527, 1.0
    %v571 = vadd.f32 %v529, 1.0
    %v572 = vadd.f32 %v531, 1.0
    %v573 = vadd.f32 %v533, 1.0
    %v574 = vadd.f32 %v535, 1.0
    %v575 = vadd.f32 %v537, 1.0
    %v576 = vadd.f32 %v539, 1.0
    %v577 = vadd.f32 %v541, 1.0
    %v578 = vadd.f32 %v543, 1.0
    %v579 = vadd.f32 %v545, 1.0
    %v580 = vadd.f32 %v547, 1.0
    %v581 = vadd.f32 %v549, 1.0
    %v582 = vrcp.pop %v550
    %v583 = vmul.f32 %v550, %v582
    %v584 = vsub.f32 1.0, %v583
    %v585 = vmul.f32 %v582, %v584
    %v586 = vadd.f32 %v582, %v585
    %vm587 = vweird.f32 %v550
    %vm588 = vweird.f32 %v582
    %vm589 = vmor %vm587, %vm588
    %v590 = vsel %vm589, %v582, %v586
    %v591 = vand.u32 2147483647, %v550
    %vm592 = vcmp.eq.f32.partialorder %v591, 8.507059e+37
    %v593 = vand.u32 %v550, 2147483648
    %v594 = vor.u32 1.1754944e-38, %v593
    %v595 = vsel %vm592, %v594, %v590
    %v596 = vmul.f32 1.0, %v595
    %v597 = vrcp.pop %v551
    %v598 = vmul.f32 %v551, %v597
    %v599 = vsub.f32 1.0, %v598
    %v600 = vmul.f32 %v597, %v599
    %v601 = vadd.f32 %v597, %v600
    %vm602 = vweird.f32 %v551
    %vm603 = vweird.f32 %v597
    %vm604 = vmor %vm602, %vm603
    %v605 = vsel %vm604, %v597, %v601
    %v606 = vand.u32 2147483647, %v551
    %vm607 = vcmp.eq.f32.partialorder %v606, 8.507059e+37
    %v608 = vand.u32 %v551, 2147483648
    %v609 = vor.u32 1.1754944e-38, %v608
    %v610 = vsel %vm607, %v609, %v605
    %v611 = vmul.f32 1.0, %v610
    %v612 = vrcp.pop %v552
    %v613 = vmul.f32 %v552, %v612
    %v614 = vsub.f32 1.0, %v613
    %v615 = vmul.f32 %v612, %v614
    %v616 = vadd.f32 %v612, %v615
    %vm617 = vweird.f32 %v552
    %vm618 = vweird.f32 %v612
    %vm619 = vmor %vm617, %vm618
    %v620 = vsel %vm619, %v612, %v616
    %v621 = vand.u32 2147483647, %v552
    %vm622 = vcmp.eq.f32.partialorder %v621, 8.507059e+37
    %v623 = vand.u32 %v552, 2147483648
    %v624 = vor.u32 1.1754944e-38, %v623
    %v625 = vsel %vm622, %v624, %v620
    %v626 = vmul.f32 1.0, %v625
    %v627 = vrcp.pop %v553
    %v628 = vmul.f32 %v553, %v627
    %v629 = vsub.f32 1.0, %v628
    %v630 = vmul.f32 %v627, %v629
    %v631 = vadd.f32 %v627, %v630
    %vm632 = vweird.f32 %v553
    %vm633 = vweird.f32 %v627
    %vm634 = vmor %vm632, %vm633
    %v635 = vsel %vm634, %v627, %v631
    %v636 = vand.u32 2147483647, %v553
    %vm637 = vcmp.eq.f32.partialorder %v636, 8.507059e+37
    %v638 = vand.u32 %v553, 2147483648
    %v639 = vor.u32 1.1754944e-38, %v638
    %v640 = vsel %vm637, %v639, %v635
    %v641 = vmul.f32 1.0, %v640
    %v642 = vrcp.pop %v554
    %v643 = vmul.f32 %v554, %v642
    %v644 = vsub.f32 1.0, %v643
    %v645 = vmul.f32 %v642, %v644
    %v646 = vadd.f32 %v642, %v645
    %vm647 = vweird.f32 %v554
    %vm648 = vweird.f32 %v642
    %vm649 = vmor %vm647, %vm648
    %v650 = vsel %vm649, %v642, %v646
    %v651 = vand.u32 2147483647, %v554
    %vm652 = vcmp.eq.f32.partialorder %v651, 8.507059e+37
    %v653 = vand.u32 %v554, 2147483648
    %v654 = vor.u32 1.1754944e-38, %v653
    %v655 = vsel %vm652, %v654, %v650
    %v656 = vmul.f32 1.0, %v655
    %v657 = vrcp.pop %v555
    %v658 = vmul.f32 %v555, %v657
    %v659 = vsub.f32 1.0, %v658
    %v660 = vmul.f32 %v657, %v659
    %v661 = vadd.f32 %v657, %v660
    %vm662 = vweird.f32 %v555
    %vm663 = vweird.f32 %v657
    %vm664 = vmor %vm662, %vm663
    %v665 = vsel %vm664, %v657, %v661
    %v666 = vand.u32 2147483647, %v555
    %vm667 = vcmp.eq.f32.partialorder %v666, 8.507059e+37
    %v668 = vand.u32 %v555, 2147483648
    %v669 = vor.u32 1.1754944e-38, %v668
    %v670 = vsel %vm667, %v669, %v665
    %v671 = vmul.f32 1.0, %v670
    %v672 = vrcp.pop %v556
    %v673 = vmul.f32 %v556, %v672
    %v674 = vsub.f32 1.0, %v673
    %v675 = vmul.f32 %v672, %v674
    %v676 = vadd.f32 %v672, %v675
    %vm677 = vweird.f32 %v556
    %vm678 = vweird.f32 %v672
    %vm679 = vmor %vm677, %vm678
    %v680 = vsel %vm679, %v672, %v676
    %v681 = vand.u32 2147483647, %v556
    %vm682 = vcmp.eq.f32.partialorder %v681, 8.507059e+37
    %v683 = vand.u32 %v556, 2147483648
    %v684 = vor.u32 1.1754944e-38, %v683
    %v685 = vsel %vm682, %v684, %v680
    %v686 = vmul.f32 1.0, %v685
    %v687 = vrcp.pop %v557
    %v688 = vmul.f32 %v557, %v687
    %v689 = vsub.f32 1.0, %v688
    %v690 = vmul.f32 %v687, %v689
    %v691 = vadd.f32 %v687, %v690
    %vm692 = vweird.f32 %v557
    %vm693 = vweird.f32 %v687
    %vm694 = vmor %vm692, %vm693
    %v695 = vsel %vm694, %v687, %v691
    %v696 = vand.u32 2147483647, %v557
    %vm697 = vcmp.eq.f32.partialorder %v696, 8.507059e+37
    %v698 = vand.u32 %v557, 2147483648
    %v699 = vor.u32 1.1754944e-38, %v698
    %v700 = vsel %vm697, %v699, %v695
    %v701 = vmul.f32 1.0, %v700
    %v702 = vrcp.pop %v558
    %v703 = vmul.f32 %v558, %v702
    %v704 = vsub.f32 1.0, %v703
    %v705 = vmul.f32 %v702, %v704
    %v706 = vadd.f32 %v702, %v705
    %vm707 = vweird.f32 %v558
    %vm708 = vweird.f32 %v702
    %vm709 = vmor %vm707, %vm708
    %v710 = vsel %vm709, %v702, %v706
    %v711 = vand.u32 2147483647, %v558
    %vm712 = vcmp.eq.f32.partialorder %v711, 8.507059e+37
    %v713 = vand.u32 %v558, 2147483648
    %v714 = vor.u32 1.1754944e-38, %v713
    %v715 = vsel %vm712, %v714, %v710
    %v716 = vmul.f32 1.0, %v715
    %v717 = vrcp.pop %v559
    %v718 = vmul.f32 %v559, %v717
    %v719 = vsub.f32 1.0, %v718
    %v720 = vmul.f32 %v717, %v719
    %v721 = vadd.f32 %v717, %v720
    %vm722 = vweird.f32 %v559
    %vm723 = vweird.f32 %v717
    %vm724 = vmor %vm722, %vm723
    %v725 = vsel %vm724, %v717, %v721
    %v726 = vand.u32 2147483647, %v559
    %vm727 = vcmp.eq.f32.partialorder %v726, 8.507059e+37
    %v728 = vand.u32 %v559, 2147483648
    %v729 = vor.u32 1.1754944e-38, %v728
    %v730 = vsel %vm727, %v729, %v725
    %v731 = vmul.f32 1.0, %v730
    %v732 = vrcp.pop %v560
    %v733 = vmul.f32 %v560, %v732
    %v734 = vsub.f32 1.0, %v733
    %v735 = vmul.f32 %v732, %v734
    %v736 = vadd.f32 %v732, %v735
    %vm737 = vweird.f32 %v560
    %vm738 = vweird.f32 %v732
    %vm739 = vmor %vm737, %vm738
    %v740 = vsel %vm739, %v732, %v736
    %v741 = vand.u32 2147483647, %v560
    %vm742 = vcmp.eq.f32.partialorder %v741, 8.507059e+37
    %v743 = vand.u32 %v560, 2147483648
    %v744 = vor.u32 1.1754944e-38, %v743
    %v745 = vsel %vm742, %v744, %v740
    %v746 = vmul.f32 1.0, %v745
    %v747 = vrcp.pop %v561
    %v748 = vmul.f32 %v561, %v747
    %v749 = vsub.f32 1.0, %v748
    %v750 = vmul.f32 %v747, %v749
    %v751 = vadd.f32 %v747, %v750
    %vm752 = vweird.f32 %v561
    %vm753 = vweird.f32 %v747
    %vm754 = vmor %vm752, %vm753
    %v755 = vsel %vm754, %v747, %v751
    %v756 = vand.u32 2147483647, %v561
    %vm757 = vcmp.eq.f32.partialorder %v756, 8.507059e+37
    %v758 = vand.u32 %v561, 2147483648
    %v759 = vor.u32 1.1754944e-38, %v758
    %v760 = vsel %vm757, %v759, %v755
    %v761 = vmul.f32 1.0, %v760
    %v762 = vrcp.pop %v562
    %v763 = vmul.f32 %v562, %v762
    %v764 = vsub.f32 1.0, %v763
    %v765 = vmul.f32 %v762, %v764
    %v766 = vadd.f32 %v762, %v765
    %vm767 = vweird.f32 %v562
    %vm768 = vweird.f32 %v762
    %vm769 = vmor %vm767, %vm768
    %v770 = vsel %vm769, %v762, %v766
    %v771 = vand.u32 2147483647, %v562
    %vm772 = vcmp.eq.f32.partialorder %v771, 8.507059e+37
    %v773 = vand.u32 %v562, 2147483648
    %v774 = vor.u32 1.1754944e-38, %v773
    %v775 = vsel %vm772, %v774, %v770
    %v776 = vmul.f32 1.0, %v775
    %v777 = vrcp.pop %v563
    %v778 = vmul.f32 %v563, %v777
    %v779 = vsub.f32 1.0, %v778
    %v780 = vmul.f32 %v777, %v779
    %v781 = vadd.f32 %v777, %v780
    %vm782 = vweird.f32 %v563
    %vm783 = vweird.f32 %v777
    %vm784 = vmor %vm782, %vm783
    %v785 = vsel %vm784, %v777, %v781
    %v786 = vand.u32 2147483647, %v563
    %vm787 = vcmp.eq.f32.partialorder %v786, 8.507059e+37
    %v788 = vand.u32 %v563, 2147483648
    %v789 = vor.u32 1.1754944e-38, %v788
    %v790 = vsel %vm787, %v789, %v785
    %v791 = vmul.f32 1.0, %v790
    %v792 = vrcp.pop %v564
    %v793 = vmul.f32 %v564, %v792
    %v794 = vsub.f32 1.0, %v793
    %v795 = vmul.f32 %v792, %v794
    %v796 = vadd.f32 %v792, %v795
    %vm797 = vweird.f32 %v564
    %vm798 = vweird.f32 %v792
    %vm799 = vmor %vm797, %vm798
    %v800 = vsel %vm799, %v792, %v796
    %v801 = vand.u32 2147483647, %v564
    %vm802 = vcmp.eq.f32.partialorder %v801, 8.507059e+37
    %v803 = vand.u32 %v564, 2147483648
    %v804 = vor.u32 1.1754944e-38, %v803
    %v805 = vsel %vm802, %v804, %v800
    %v806 = vmul.f32 1.0, %v805
    %v807 = vrcp.pop %v565
    %v808 = vmul.f32 %v565, %v807
    %v809 = vsub.f32 1.0, %v808
    %v810 = vmul.f32 %v807, %v809
    %v811 = vadd.f32 %v807, %v810
    %vm812 = vweird.f32 %v565
    %vm813 = vweird.f32 %v807
    %vm814 = vmor %vm812, %vm813
    %v815 = vsel %vm814, %v807, %v811
    %v816 = vand.u32 2147483647, %v565
    %vm817 = vcmp.eq.f32.partialorder %v816, 8.507059e+37
    %v818 = vand.u32 %v565, 2147483648
    %v819 = vor.u32 1.1754944e-38, %v818
    %v820 = vsel %vm817, %v819, %v815
    %v821 = vmul.f32 1.0, %v820
    %v822 = vrcp.pop %v566
    %v823 = vmul.f32 %v566, %v822
    %v824 = vsub.f32 1.0, %v823
    %v825 = vmul.f32 %v822, %v824
    %v826 = vadd.f32 %v822, %v825
    %vm827 = vweird.f32 %v566
    %vm828 = vweird.f32 %v822
    %vm829 = vmor %vm827, %vm828
    %v830 = vsel %vm829, %v822, %v826
    %v831 = vand.u32 2147483647, %v566
    %vm832 = vcmp.eq.f32.partialorder %v831, 8.507059e+37
    %v833 = vand.u32 %v566, 2147483648
    %v834 = vor.u32 1.1754944e-38, %v833
    %v835 = vsel %vm832, %v834, %v830
    %v836 = vmul.f32 1.0, %v835
    %v837 = vrcp.pop %v567
    %v838 = vmul.f32 %v567, %v837
    %v839 = vsub.f32 1.0, %v838
    %v840 = vmul.f32 %v837, %v839
    %v841 = vadd.f32 %v837, %v840
    %vm842 = vweird.f32 %v567
    %vm843 = vweird.f32 %v837
    %vm844 = vmor %vm842, %vm843
    %v845 = vsel %vm844, %v837, %v841
    %v846 = vand.u32 2147483647, %v567
    %vm847 = vcmp.eq.f32.partialorder %v846, 8.507059e+37
    %v848 = vand.u32 %v567, 2147483648
    %v849 = vor.u32 1.1754944e-38, %v848
    %v850 = vsel %vm847, %v849, %v845
    %v851 = vmul.f32 1.0, %v850
    %v852 = vrcp.pop %v568
    %v853 = vmul.f32 %v568, %v852
    %v854 = vsub.f32 1.0, %v853
    %v855 = vmul.f32 %v852, %v854
    %v856 = vadd.f32 %v852, %v855
    %vm857 = vweird.f32 %v568
    %vm858 = vweird.f32 %v852
    %vm859 = vmor %vm857, %vm858
    %v860 = vsel %vm859, %v852, %v856
    %v861 = vand.u32 2147483647, %v568
    %vm862 = vcmp.eq.f32.partialorder %v861, 8.507059e+37
    %v863 = vand.u32 %v568, 2147483648
    %v864 = vor.u32 1.1754944e-38, %v863
    %v865 = vsel %vm862, %v864, %v860
    %v866 = vmul.f32 1.0, %v865
    %v867 = vrcp.pop %v569
    %v868 = vmul.f32 %v569, %v867
    %v869 = vsub.f32 1.0, %v868
    %v870 = vmul.f32 %v867, %v869
    %v871 = vadd.f32 %v867, %v870
    %vm872 = vweird.f32 %v569
    %vm873 = vweird.f32 %v867
    %vm874 = vmor %vm872, %vm873
    %v875 = vsel %vm874, %v867, %v871
    %v876 = vand.u32 2147483647, %v569
    %vm877 = vcmp.eq.f32.partialorder %v876, 8.507059e+37
    %v878 = vand.u32 %v569, 2147483648
    %v879 = vor.u32 1.1754944e-38, %v878
    %v880 = vsel %vm877, %v879, %v875
    %v881 = vmul.f32 1.0, %v880
    %v882 = vrcp.pop %v570
    %v883 = vmul.f32 %v570, %v882
    %v884 = vsub.f32 1.0, %v883
    %v885 = vmul.f32 %v882, %v884
    %v886 = vadd.f32 %v882, %v885
    %vm887 = vweird.f32 %v570
    %vm888 = vweird.f32 %v882
    %vm889 = vmor %vm887, %vm888
    %v890 = vsel %vm889, %v882, %v886
    %v891 = vand.u32 2147483647, %v570
    %vm892 = vcmp.eq.f32.partialorder %v891, 8.507059e+37
    %v893 = vand.u32 %v570, 2147483648
    %v894 = vor.u32 1.1754944e-38, %v893
    %v895 = vsel %vm892, %v894, %v890
    %v896 = vmul.f32 1.0, %v895
    %v897 = vrcp.pop %v571
    %v898 = vmul.f32 %v571, %v897
    %v899 = vsub.f32 1.0, %v898
    %v900 = vmul.f32 %v897, %v899
    %v901 = vadd.f32 %v897, %v900
    %vm902 = vweird.f32 %v571
    %vm903 = vweird.f32 %v897
    %vm904 = vmor %vm902, %vm903
    %v905 = vsel %vm904, %v897, %v901
    %v906 = vand.u32 2147483647, %v571
    %vm907 = vcmp.eq.f32.partialorder %v906, 8.507059e+37
    %v908 = vand.u32 %v571, 2147483648
    %v909 = vor.u32 1.1754944e-38, %v908
    %v910 = vsel %vm907, %v909, %v905
    %v911 = vmul.f32 1.0, %v910
    %v912 = vrcp.pop %v572
    %v913 = vmul.f32 %v572, %v912
    %v914 = vsub.f32 1.0, %v913
    %v915 = vmul.f32 %v912, %v914
    %v916 = vadd.f32 %v912, %v915
    %vm917 = vweird.f32 %v572
    %vm918 = vweird.f32 %v912
    %vm919 = vmor %vm917, %vm918
    %v920 = vsel %vm919, %v912, %v916
    %v921 = vand.u32 2147483647, %v572
    %vm922 = vcmp.eq.f32.partialorder %v921, 8.507059e+37
    %v923 = vand.u32 %v572, 2147483648
    %v924 = vor.u32 1.1754944e-38, %v923
    %v925 = vsel %vm922, %v924, %v920
    %v926 = vmul.f32 1.0, %v925
    %v927 = vrcp.pop %v573
    %v928 = vmul.f32 %v573, %v927
    %v929 = vsub.f32 1.0, %v928
    %v930 = vmul.f32 %v927, %v929
    %v931 = vadd.f32 %v927, %v930
    %vm932 = vweird.f32 %v573
    %vm933 = vweird.f32 %v927
    %vm934 = vmor %vm932, %vm933
    %v935 = vsel %vm934, %v927, %v931
    %v936 = vand.u32 2147483647, %v573
    %vm937 = vcmp.eq.f32.partialorder %v936, 8.507059e+37
    %v938 = vand.u32 %v573, 2147483648
    %v939 = vor.u32 1.1754944e-38, %v938
    %v940 = vsel %vm937, %v939, %v935
    %v941 = vmul.f32 1.0, %v940
    %v942 = vrcp.pop %v574
    %v943 = vmul.f32 %v574, %v942
    %v944 = vsub.f32 1.0, %v943
    %v945 = vmul.f32 %v942, %v944
    %v946 = vadd.f32 %v942, %v945
    %vm947 = vweird.f32 %v574
    %vm948 = vweird.f32 %v942
    %vm949 = vmor %vm947, %vm948
    %v950 = vsel %vm949, %v942, %v946
    %v951 = vand.u32 2147483647, %v574
    %vm952 = vcmp.eq.f32.partialorder %v951, 8.507059e+37
    %v953 = vand.u32 %v574, 2147483648
    %v954 = vor.u32 1.1754944e-38, %v953
    %v955 = vsel %vm952, %v954, %v950
    %v956 = vmul.f32 1.0, %v955
    %v957 = vrcp.pop %v575
    %v958 = vmul.f32 %v575, %v957
    %v959 = vsub.f32 1.0, %v958
    %v960 = vmul.f32 %v957, %v959
    %v961 = vadd.f32 %v957, %v960
    %vm962 = vweird.f32 %v575
    %vm963 = vweird.f32 %v957
    %vm964 = vmor %vm962, %vm963
    %v965 = vsel %vm964, %v957, %v961
    %v966 = vand.u32 2147483647, %v575
    %vm967 = vcmp.eq.f32.partialorder %v966, 8.507059e+37
    %v968 = vand.u32 %v575, 2147483648
    %v969 = vor.u32 1.1754944e-38, %v968
    %v970 = vsel %vm967, %v969, %v965
    %v971 = vmul.f32 1.0, %v970
    %v972 = vrcp.pop %v576
    %v973 = vmul.f32 %v576, %v972
    %v974 = vsub.f32 1.0, %v973
    %v975 = vmul.f32 %v972, %v974
    %v976 = vadd.f32 %v972, %v975
    %vm977 = vweird.f32 %v576
    %vm978 = vweird.f32 %v972
    %vm979 = vmor %vm977, %vm978
    %v980 = vsel %vm979, %v972, %v976
    %v981 = vand.u32 2147483647, %v576
    %vm982 = vcmp.eq.f32.partialorder %v981, 8.507059e+37
    %v983 = vand.u32 %v576, 2147483648
    %v984 = vor.u32 1.1754944e-38, %v983
    %v985 = vsel %vm982, %v984, %v980
    %v986 = vmul.f32 1.0, %v985
    %v987 = vrcp.pop %v577
    %v988 = vmul.f32 %v577, %v987
    %v989 = vsub.f32 1.0, %v988
    %v990 = vmul.f32 %v987, %v989
    %v991 = vadd.f32 %v987, %v990
    %vm992 = vweird.f32 %v577
    %vm993 = vweird.f32 %v987
    %vm994 = vmor %vm992, %vm993
    %v995 = vsel %vm994, %v987, %v991
    %v996 = vand.u32 2147483647, %v577
    %vm997 = vcmp.eq.f32.partialorder %v996, 8.507059e+37
    %v998 = vand.u32 %v577, 2147483648
    %v999 = vor.u32 1.1754944e-38, %v998
    %v1000 = vsel %vm997, %v999, %v995
    %v1001 = vmul.f32 1.0, %v1000
    %v1002 = vrcp.pop %v578
    %v1003 = vmul.f32 %v578, %v1002
    %v1004 = vsub.f32 1.0, %v1003
    %v1005 = vmul.f32 %v1002, %v1004
    %v1006 = vadd.f32 %v1002, %v1005
    %vm1007 = vweird.f32 %v578
    %vm1008 = vweird.f32 %v1002
    %vm1009 = vmor %vm1007, %vm1008
    %v1010 = vsel %vm1009, %v1002, %v1006
    %v1011 = vand.u32 2147483647, %v578
    %vm1012 = vcmp.eq.f32.partialorder %v1011, 8.507059e+37
    %v1013 = vand.u32 %v578, 2147483648
    %v1014 = vor.u32 1.1754944e-38, %v1013
    %v1015 = vsel %vm1012, %v1014, %v1010
    %v1016 = vmul.f32 1.0, %v1015
    %v1017 = vrcp.pop %v579
    %v1018 = vmul.f32 %v579, %v1017
    %v1019 = vsub.f32 1.0, %v1018
    %v1020 = vmul.f32 %v1017, %v1019
    %v1021 = vadd.f32 %v1017, %v1020
    %vm1022 = vweird.f32 %v579
    %vm1023 = vweird.f32 %v1017
    %vm1024 = vmor %vm1022, %vm1023
    %v1025 = vsel %vm1024, %v1017, %v1021
    %v1026 = vand.u32 2147483647, %v579
    %vm1027 = vcmp.eq.f32.partialorder %v1026, 8.507059e+37
    %v1028 = vand.u32 %v579, 2147483648
    %v1029 = vor.u32 1.1754944e-38, %v1028
    %v1030 = vsel %vm1027, %v1029, %v1025
    %v1031 = vmul.f32 1.0, %v1030
    %v1032 = vrcp.pop %v580
    %v1033 = vmul.f32 %v580, %v1032
    %v1034 = vsub.f32 1.0, %v1033
    %v1035 = vmul.f32 %v1032, %v1034
    %v1036 = vadd.f32 %v1032, %v1035
    %vm1037 = vweird.f32 %v580
    %vm1038 = vweird.f32 %v1032
    %vm1039 = vmor %vm1037, %vm1038
    %v1040 = vsel %vm1039, %v1032, %v1036
    %v1041 = vand.u32 2147483647, %v580
    %vm1042 = vcmp.eq.f32.partialorder %v1041, 8.507059e+37
    %v1043 = vand.u32 %v580, 2147483648
    %v1044 = vor.u32 1.1754944e-38, %v1043
    %v1045 = vsel %vm1042, %v1044, %v1040
    %v1046 = vmul.f32 1.0, %v1045
    %v1047 = vrcp.pop %v581
    %v1048 = vmul.f32 %v581, %v1047
    %v1049 = vsub.f32 1.0, %v1048
    %v1050 = vmul.f32 %v1047, %v1049
    %v1051 = vadd.f32 %v1047, %v1050
    %vm1052 = vweird.f32 %v581
    %vm1053 = vweird.f32 %v1047
    %vm1054 = vmor %vm1052, %vm1053
    %v1055 = vsel %vm1054, %v1047, %v1051
    %v1056 = vand.u32 2147483647, %v581
    %vm1057 = vcmp.eq.f32.partialorder %v1056, 8.507059e+37
    %v1058 = vand.u32 %v581, 2147483648
    %v1059 = vor.u32 1.1754944e-38, %v1058
    %v1060 = vsel %vm1057, %v1059, %v1055
    %v1061 = vmul.f32 1.0, %v1060
    %vm1062 = vcmp.ge.f32.partialorder %v180, 0.0
    %vm1063 = vcmp.ge.f32.partialorder %v245, 0.0
    %vm1064 = vcmp.ge.f32.partialorder %v183, 0.0
    %vm1065 = vcmp.ge.f32.partialorder %v248, 0.0
    %vm1066 = vcmp.ge.f32.partialorder %v186, 0.0
    %vm1067 = vcmp.ge.f32.partialorder %v251, 0.0
    %vm1068 = vcmp.ge.f32.partialorder %v189, 0.0
    %vm1069 = vcmp.ge.f32.partialorder %v254, 0.0
    %vm1070 = vcmp.ge.f32.partialorder %v192, 0.0
    %vm1071 = vcmp.ge.f32.partialorder %v257, 0.0
    %vm1072 = vcmp.ge.f32.partialorder %v195, 0.0
    %vm1073 = vcmp.ge.f32.partialorder %v260, 0.0
    %vm1074 = vcmp.ge.f32.partialorder %v198, 0.0
    %vm1075 = vcmp.ge.f32.partialorder %v263, 0.0
    %vm1076 = vcmp.ge.f32.partialorder %v201, 0.0
    %vm1077 = vcmp.ge.f32.partialorder %v266, 0.0
    %vm1078 = vcmp.ge.f32.partialorder %v204, 0.0
    %vm1079 = vcmp.ge.f32.partialorder %v269, 0.0
    %vm1080 = vcmp.ge.f32.partialorder %v207, 0.0
    %vm1081 = vcmp.ge.f32.partialorder %v272, 0.0
    %vm1082 = vcmp.ge.f32.partialorder %v210, 0.0
    %vm1083 = vcmp.ge.f32.partialorder %v275, 0.0
    %vm1084 = vcmp.ge.f32.partialorder %v213, 0.0
    %vm1085 = vcmp.ge.f32.partialorder %v278, 0.0
    %vm1086 = vcmp.ge.f32.partialorder %v216, 0.0
    %vm1087 = vcmp.ge.f32.partialorder %v281, 0.0
    %vm1088 = vcmp.ge.f32.partialorder %v219, 0.0
    %vm1089 = vcmp.ge.f32.partialorder %v284, 0.0
    %vm1090 = vcmp.ge.f32.partialorder %v222, 0.0
    %vm1091 = vcmp.ge.f32.partialorder %v287, 0.0
    %vm1092 = vcmp.ge.f32.partialorder %v225, 0.0
    %vm1093 = vcmp.ge.f32.partialorder %v290, 0.0
    %v1094 = vmul.f32 %v487, %v596
    %v1095 = vmul.f32 %v489, %v611
    %v1096 = vmul.f32 %v491, %v626
    %v1097 = vmul.f32 %v493, %v641
    %v1098 = vmul.f32 %v495, %v656
    %v1099 = vmul.f32 %v497, %v671
    %v1100 = vmul.f32 %v499, %v686
    %v1101 = vmul.f32 %v501, %v701
    %v1102 = vmul.f32 %v503, %v716
    %v1103 = vmul.f32 %v505, %v731
    %v1104 = vmul.f32 %v507, %v746
    %v1105 = vmul.f32 %v509, %v761
    %v1106 = vmul.f32 %v511, %v776
    %v1107 = vmul.f32 %v513, %v791
    %v1108 = vmul.f32 %v515, %v806
    %v1109 = vmul.f32 %v517, %v821
    %v1110 = vmul.f32 %v519, %v836
    %v1111 = vmul.f32 %v521, %v851
    %v1112 = vmul.f32 %v523, %v866
    %v1113 = vmul.f32 %v525, %v881
    %v1114 = vmul.f32 %v527, %v896
    %v1115 = vmul.f32 %v529, %v911
    %v1116 = vmul.f32 %v531, %v926
    %v1117 = vmul.f32 %v533, %v941
    %v1118 = vmul.f32 %v535, %v956
    %v1119 = vmul.f32 %v537, %v971
    %v1120 = vmul.f32 %v539, %v986
    %v1121 = vmul.f32 %v541, %v1001
    %v1122 = vmul.f32 %v543, %v1016
    %v1123 = vmul.f32 %v545, %v1031
    %v1124 = vmul.f32 %v547, %v1046
    %v1125 = vmul.f32 %v549, %v1061
    %v1126 = vsel %vm1062, %v596, %v1094
    %v1127 = vsel %vm1063, %v611, %v1095
    %v1128 = vsel %vm1064, %v626, %v1096
    %v1129 = vsel %vm1065, %v641, %v1097
    %v1130 = vsel %vm1066, %v656, %v1098
    %v1131 = vsel %vm1067, %v671, %v1099
    %v1132 = vsel %vm1068, %v686, %v1100
    %v1133 = vsel %vm1069, %v701, %v1101
    %v1134 = vsel %vm1070, %v716, %v1102
    %v1135 = vsel %vm1071, %v731, %v1103
    %v1136 = vsel %vm1072, %v746, %v1104
    %v1137 = vsel %vm1073, %v761, %v1105
    %v1138 = vsel %vm1074, %v776, %v1106
    %v1139 = vsel %vm1075, %v791, %v1107
    %v1140 = vsel %vm1076, %v806, %v1108
    %v1141 = vsel %vm1077, %v821, %v1109
    %v1142 = vsel %vm1078, %v836, %v1110
    %v1143 = vsel %vm1079, %v851, %v1111
    %v1144 = vsel %vm1080, %v866, %v1112
    %v1145 = vsel %vm1081, %v881, %v1113
    %v1146 = vsel %vm1082, %v896, %v1114
    %v1147 = vsel %vm1083, %v911, %v1115
    %v1148 = vsel %vm1084, %v926, %v1116
    %v1149 = vsel %vm1085, %v941, %v1117
    %v1150 = vsel %vm1086, %v956, %v1118
    %v1151 = vsel %vm1087, %v971, %v1119
    %v1152 = vsel %vm1088, %v986, %v1120
    %v1153 = vsel %vm1089, %v1001, %v1121
    %v1154 = vsel %vm1090, %v1016, %v1122
    %v1155 = vsel %vm1091, %v1031, %v1123
    %v1156 = vsel %vm1092, %v1046, %v1124
    %v1157 = vsel %vm1093, %v1061, %v1125
    %v1158 = vmul.f32 %v180, %v1126
    %v1159 = vmul.f32 %v245, %v1127
    %v1160 = vmul.f32 %v183, %v1128
    %v1161 = vmul.f32 %v248, %v1129
    %v1162 = vmul.f32 %v186, %v1130
    %v1163 = vmul.f32 %v251, %v1131
    %v1164 = vmul.f32 %v189, %v1132
    %v1165 = vmul.f32 %v254, %v1133
    %v1166 = vmul.f32 %v192, %v1134
    %v1167 = vmul.f32 %v257, %v1135
    %v1168 = vmul.f32 %v195, %v1136
    %v1169 = vmul.f32 %v260, %v1137
    %v1170 = vmul.f32 %v198, %v1138
    %v1171 = vmul.f32 %v263, %v1139
    %v1172 = vmul.f32 %v201, %v1140
    %v1173 = vmul.f32 %v266, %v1141
    %v1174 = vmul.f32 %v204, %v1142
    %v1175 = vmul.f32 %v269, %v1143
    %v1176 = vmul.f32 %v207, %v1144
    %v1177 = vmul.f32 %v272, %v1145
    %v1178 = vmul.f32 %v210, %v1146
    %v1179 = vmul.f32 %v275, %v1147
    %v1180 = vmul.f32 %v213, %v1148
    %v1181 = vmul.f32 %v278, %v1149
    %v1182 = vmul.f32 %v216, %v1150
    %v1183 = vmul.f32 %v281, %v1151
    %v1184 = vmul.f32 %v219, %v1152
    %v1185 = vmul.f32 %v284, %v1153
    %v1186 = vmul.f32 %v222, %v1154
    %v1187 = vmul.f32 %v287, %v1155
    %v1188 = vmul.f32 %v225, %v1156
    %v1189 = vmul.f32 %v290, %v1157
    %v1190 = vmul.f32 %v1158, %v310
    %v1191 = vmul.f32 %v1159, %v375
    %v1192 = vmul.f32 %v1160, %v313
    %v1193 = vmul.f32 %v1161, %v378
    %v1194 = vmul.f32 %v1162, %v316
    %v1195 = vmul.f32 %v1163, %v381
    %v1196 = vmul.f32 %v1164, %v319
    %v1197 = vmul.f32 %v1165, %v384
    %v1198 = vmul.f32 %v1166, %v322
    %v1199 = vmul.f32 %v1167, %v387
    %v1200 = vmul.f32 %v1168, %v325
    %v1201 = vmul.f32 %v1169, %v390
    %v1202 = vmul.f32 %v1170, %v328
    %v1203 = vmul.f32 %v1171, %v393
    %v1204 = vmul.f32 %v1172, %v331
    %v1205 = vmul.f32 %v1173, %v396
    %v1206 = vmul.f32 %v1174, %v334
    %v1207 = vmul.f32 %v1175, %v399
    %v1208 = vmul.f32 %v1176, %v337
    %v1209 = vmul.f32 %v1177, %v402
    %v1210 = vmul.f32 %v1178, %v340
    %v1211 = vmul.f32 %v1179, %v405
    %v1212 = vmul.f32 %v1180, %v343
    %v1213 = vmul.f32 %v1181, %v408
    %v1214 = vmul.f32 %v1182, %v346
    %v1215 = vmul.f32 %v1183, %v411
    %v1216 = vmul.f32 %v1184, %v349
    %v1217 = vmul.f32 %v1185, %v414
    %v1218 = vmul.f32 %v1186, %v352
    %v1219 = vmul.f32 %v1187, %v417
    %v1220 = vmul.f32 %v1188, %v355
    %v1221 = vmul.f32 %v1189, %v420
    %v1222 = vld [vmem:[#allocation2] sm:$0xff]
    %v1223 = vld [vmem:[#allocation2 + $0x8] sm:$0xff]
    %v1224 = vld [vmem:[#allocation2 + $0x10] sm:$0xff]
    %v1225 = vld [vmem:[#allocation2 + $0x18] sm:$0xff]
    %v1226 = vld [vmem:[#allocation2 + $0x20] sm:$0xff]
    %v1227 = vld [vmem:[#allocation2 + $0x28] sm:$0xff]
    %v1228 = vld [vmem:[#allocation2 + $0x30] sm:$0xff]
    %v1229 = vld [vmem:[#allocation2 + $0x38] sm:$0xff]
    %v1230 = vld [vmem:[#allocation2 + $0x40] sm:$0xff]
    %v1231 = vld [vmem:[#allocation2 + $0x48] sm:$0xff]
    %v1232 = vld [vmem:[#allocation2 + $0x50] sm:$0xff]
    %v1233 = vld [vmem:[#allocation2 + $0x58] sm:$0xff]
    %v1234 = vld [vmem:[#allocation2 + $0x60] sm:$0xff]
    %v1235 = vld [vmem:[#allocation2 + $0x68] sm:$0xff]
    %v1236 = vld [vmem:[#allocation2 + $0x70] sm:$0xff]
    %v1237 = vld [vmem:[#allocation2 + $0x78] sm:$0xff]
    %v1238 = vld [vmem:[#allocation8] sm:$0xff]
    %v1239 = vld [vmem:[#allocation8 + $0x8] sm:$0xff]
    %v1240 = vld [vmem:[#allocation8 + $0x10] sm:$0xff]
    %v1241 = vld [vmem:[#allocation8 + $0x18] sm:$0xff]
    %v1242 = vld [vmem:[#allocation8 + $0x20] sm:$0xff]
    %v1243 = vld [vmem:[#allocation8 + $0x28] sm:$0xff]
    %v1244 = vld [vmem:[#allocation8 + $0x30] sm:$0xff]
    %v1245 = vld [vmem:[#allocation8 + $0x38] sm:$0xff]
    %v1246 = vld [vmem:[#allocation8 + $0x40] sm:$0xff]
    %v1247 = vld [vmem:[#allocation8 + $0x48] sm:$0xff]
    %v1248 = vld [vmem:[#allocation8 + $0x50] sm:$0xff]
    %v1249 = vld [vmem:[#allocation8 + $0x58] sm:$0xff]
    %v1250 = vld [vmem:[#allocation8 + $0x60] sm:$0xff]
    %v1251 = vld [vmem:[#allocation8 + $0x68] sm:$0xff]
    %v1252 = vld [vmem:[#allocation8 + $0x70] sm:$0xff]
    %v1253 = vld [vmem:[#allocation8 + $0x78] sm:$0xff]
    %v1254 = vld [vmem:[#allocation8 + $0x80] sm:$0xff]
    %v1255 = vld [vmem:[#allocation8 + $0x88] sm:$0xff]
    %v1256 = vld [vmem:[#allocation8 + $0x90] sm:$0xff]
    %v1257 = vld [vmem:[#allocation8 + $0x98] sm:$0xff]
    %v1258 = vld [vmem:[#allocation8 + $0xa0] sm:$0xff]
    %v1259 = vld [vmem:[#allocation8 + $0xa8] sm:$0xff]
    %v1260 = vld [vmem:[#allocation8 + $0xb0] sm:$0xff]
    %v1261 = vld [vmem:[#allocation8 + $0xb8] sm:$0xff]
    %v1262 = vld [vmem:[#allocation8 + $0xc0] sm:$0xff]
    %v1263 = vld [vmem:[#allocation8 + $0xc8] sm:$0xff]
    %v1264 = vld [vmem:[#allocation8 + $0xd0] sm:$0xff]
    %v1265 = vld [vmem:[#allocation8 + $0xd8] sm:$0xff]
    %v1266 = vld [vmem:[#allocation8 + $0xe0] sm:$0xff]
    %v1267 = vld [vmem:[#allocation8 + $0xe8] sm:$0xff]
    %v1268 = vld [vmem:[#allocation8 + $0xf0] sm:$0xff]
    %v1269 = vld [vmem:[#allocation8 + $0xf8] sm:$0xff]
    %1270 = vmatpush.xpose.msra.mxu0 %v1268
    %1271 = vmatpush.xpose.msra.mxu0 %v1266
    %1272 = vmatpush.xpose.msra.mxu0 %v1264
    %1273 = vmatpush.xpose.msra.mxu0 %v1262
    %1274 = vmatpush.xpose.msra.mxu0 %v1260
    %1275 = vmatpush.xpose.msra.mxu0 %v1258
    %1276 = vmatpush.xpose.msra.mxu0 %v1256
    %1277 = vmatpush.xpose.msra.mxu0 %v1254
    %1278 = vmatpush.xpose.msra.mxu0 %v1252
    %1279 = vmatpush.xpose.msra.mxu0 %v1250
    %1280 = vmatpush.xpose.msra.mxu0 %v1248
    %1281 = vmatpush.xpose.msra.mxu0 %v1246
    %1282 = vmatpush.xpose.msra.mxu0 %v1244
    %1283 = vmatpush.xpose.msra.mxu0 %v1242
    %1284 = vmatpush.xpose.msra.mxu0 %v1240
    %1285 = vmatpush.xpose.msra.mxu0 %v1238
    %1286 = vmatmul.f32.gmra.mxu0 %v1190
    %v1287 = vpop.f32.mrf.mxu0
    %v1288 = vadd.f32 0.0, %v1287
    %1289 = vmatmul.f32.gmra.mxu0 %v1192
    %v1290 = vpop.f32.mrf.mxu0
    %v1291 = vadd.f32 0.0, %v1290
    %1292 = vmatmul.f32.gmra.mxu0 %v1194
    %v1293 = vpop.f32.mrf.mxu0
    %v1294 = vadd.f32 0.0, %v1293
    %1295 = vmatmul.f32.gmra.mxu0 %v1196
    %v1296 = vpop.f32.mrf.mxu0
    %v1297 = vadd.f32 0.0, %v1296
    %1298 = vmatmul.f32.gmra.mxu0 %v1198
    %v1299 = vpop.f32.mrf.mxu0
    %v1300 = vadd.f32 0.0, %v1299
    %1301 = vmatmul.f32.gmra.mxu0 %v1200
    %v1302 = vpop.f32.mrf.mxu0
    %v1303 = vadd.f32 0.0, %v1302
    %1304 = vmatmul.f32.gmra.mxu0 %v1202
    %v1305 = vpop.f32.mrf.mxu0
    %v1306 = vadd.f32 0.0, %v1305
    %1307 = vmatmul.f32.gmra.mxu0 %v1204
    %v1308 = vpop.f32.mrf.mxu0
    %v1309 = vadd.f32 0.0, %v1308
    %1310 = vmatmul.f32.gmra.mxu0 %v1206
    %v1311 = vpop.f32.mrf.mxu0
    %v1312 = vadd.f32 0.0, %v1311
    %1313 = vmatmul.f32.gmra.mxu0 %v1208
    %v1314 = vpop.f32.mrf.mxu0
    %v1315 = vadd.f32 0.0, %v1314
    %1316 = vmatmul.f32.gmra.mxu0 %v1210
    %v1317 = vpop.f32.mrf.mxu0
    %v1318 = vadd.f32 0.0, %v1317
    %1319 = vmatmul.f32.gmra.mxu0 %v1212
    %v1320 = vpop.f32.mrf.mxu0
    %v1321 = vadd.f32 0.0, %v1320
    %1322 = vmatmul.f32.gmra.mxu0 %v1214
    %v1323 = vpop.f32.mrf.mxu0
    %v1324 = vadd.f32 0.0, %v1323
    %1325 = vmatmul.f32.gmra.mxu0 %v1216
    %v1326 = vpop.f32.mrf.mxu0
    %v1327 = vadd.f32 0.0, %v1326
    %1328 = vmatmul.f32.gmra.mxu0 %v1218
    %v1329 = vpop.f32.mrf.mxu0
    %v1330 = vadd.f32 0.0, %v1329
    %1331 = vmatmul.f32.gmra.mxu0 %v1220
    %v1332 = vpop.f32.mrf.mxu0
    %v1333 = vadd.f32 0.0, %v1332
    %1334 = vdwg.mxu0
    %1335 = vmatpush.xpose.msra.mxu0 %v1269
    %1336 = vmatpush.xpose.msra.mxu0 %v1267
    %1337 = vmatpush.xpose.msra.mxu0 %v1265
    %1338 = vmatpush.xpose.msra.mxu0 %v1263
    %1339 = vmatpush.xpose.msra.mxu0 %v1261
    %1340 = vmatpush.xpose.msra.mxu0 %v1259
    %1341 = vmatpush.xpose.msra.mxu0 %v1257
    %1342 = vmatpush.xpose.msra.mxu0 %v1255
    %1343 = vmatpush.xpose.msra.mxu0 %v1253
    %1344 = vmatpush.xpose.msra.mxu0 %v1251
    %1345 = vmatpush.xpose.msra.mxu0 %v1249
    %1346 = vmatpush.xpose.msra.mxu0 %v1247
    %1347 = vmatpush.xpose.msra.mxu0 %v1245
    %1348 = vmatpush.xpose.msra.mxu0 %v1243
    %1349 = vmatpush.xpose.msra.mxu0 %v1241
    %1350 = vmatpush.xpose.msra.mxu0 %v1239
    %1351 = vmatmul.f32.gmra.mxu0 %v1191
    %v1352 = vpop.f32.mrf.mxu0
    %v1353 = vadd.f32 %v1288, %v1352
    %1354 = vmatmul.f32.gmra.mxu0 %v1193
    %v1355 = vpop.f32.mrf.mxu0
    %v1356 = vadd.f32 %v1291, %v1355
    %1357 = vmatmul.f32.gmra.mxu0 %v1195
    %v1358 = vpop.f32.mrf.mxu0
    %v1359 = vadd.f32 %v1294, %v1358
    %1360 = vmatmul.f32.gmra.mxu0 %v1197
    %v1361 = vpop.f32.mrf.mxu0
    %v1362 = vadd.f32 %v1297, %v1361
    %1363 = vmatmul.f32.gmra.mxu0 %v1199
    %v1364 = vpop.f32.mrf.mxu0
    %v1365 = vadd.f32 %v1300, %v1364
    %1366 = vmatmul.f32.gmra.mxu0 %v1201
    %v1367 = vpop.f32.mrf.mxu0
    %v1368 = vadd.f32 %v1303, %v1367
    %1369 = vmatmul.f32.gmra.mxu0 %v1203
    %v1370 = vpop.f32.mrf.mxu0
    %v1371 = vadd.f32 %v1306, %v1370
    %1372 = vmatmul.f32.gmra.mxu0 %v1205
    %v1373 = vpop.f32.mrf.mxu0
    %v1374 = vadd.f32 %v1309, %v1373
    %1375 = vmatmul.f32.gmra.mxu0 %v1207
    %v1376 = vpop.f32.mrf.mxu0
    %v1377 = vadd.f32 %v1312, %v1376
    %1378 = vmatmul.f32.gmra.mxu0 %v1209
    %v1379 = vpop.f32.mrf.mxu0
    %v1380 = vadd.f32 %v1315, %v1379
    %1381 = vmatmul.f32.gmra.mxu0 %v1211
    %v1382 = vpop.f32.mrf.mxu0
    %v1383 = vadd.f32 %v1318, %v1382
    %1384 = vmatmul.f32.gmra.mxu0 %v1213
    %v1385 = vpop.f32.mrf.mxu0
    %v1386 = vadd.f32 %v1321, %v1385
    %1387 = vmatmul.f32.gmra.mxu0 %v1215
    %v1388 = vpop.f32.mrf.mxu0
    %v1389 = vadd.f32 %v1324, %v1388
    %1390 = vmatmul.f32.gmra.mxu0 %v1217
    %v1391 = vpop.f32.mrf.mxu0
    %v1392 = vadd.f32 %v1327, %v1391
    %1393 = vmatmul.f32.gmra.mxu0 %v1219
    %v1394 = vpop.f32.mrf.mxu0
    %v1395 = vadd.f32 %v1330, %v1394
    %1396 = vmatmul.f32.gmra.mxu0 %v1221
    %v1397 = vpop.f32.mrf.mxu0
    %v1398 = vadd.f32 %v1333, %v1397
    %1399 = vdwg.mxu0
    %v1400 = vadd.f32 %v1222, %v1353
    %v1401 = vadd.f32 %v1223, %v1356
    %v1402 = vadd.f32 %v1224, %v1359
    %v1403 = vadd.f32 %v1225, %v1362
    %v1404 = vadd.f32 %v1226, %v1365
    %v1405 = vadd.f32 %v1227, %v1368
    %v1406 = vadd.f32 %v1228, %v1371
    %v1407 = vadd.f32 %v1229, %v1374
    %v1408 = vadd.f32 %v1230, %v1377
    %v1409 = vadd.f32 %v1231, %v1380
    %v1410 = vadd.f32 %v1232, %v1383
    %v1411 = vadd.f32 %v1233, %v1386
    %v1412 = vadd.f32 %v1234, %v1389
    %v1413 = vadd.f32 %v1235, %v1392
    %v1414 = vadd.f32 %v1236, %v1395
    %v1415 = vadd.f32 %v1237, %v1398
    %1416 = vst [vmem:[#allocation2] sm:$0xff] %v1400
    %1417 = vst [vmem:[#allocation2 + $0x8] sm:$0xff] %v1401
    %1418 = vst [vmem:[#allocation2 + $0x10] sm:$0xff] %v1402
    %1419 = vst [vmem:[#allocation2 + $0x18] sm:$0xff] %v1403
    %1420 = vst [vmem:[#allocation2 + $0x20] sm:$0xff] %v1404
    %1421 = vst [vmem:[#allocation2 + $0x28] sm:$0xff] %v1405
    %1422 = vst [vmem:[#allocation2 + $0x30] sm:$0xff] %v1406
    %1423 = vst [vmem:[#allocation2 + $0x38] sm:$0xff] %v1407
    %1424 = vst [vmem:[#allocation2 + $0x40] sm:$0xff] %v1408
    %1425 = vst [vmem:[#allocation2 + $0x48] sm:$0xff] %v1409
    %1426 = vst [vmem:[#allocation2 + $0x50] sm:$0xff] %v1410
    %1427 = vst [vmem:[#allocation2 + $0x58] sm:$0xff] %v1411
    %1428 = vst [vmem:[#allocation2 + $0x60] sm:$0xff] %v1412
    %1429 = vst [vmem:[#allocation2 + $0x68] sm:$0xff] %v1413
    %1430 = vst [vmem:[#allocation2 + $0x70] sm:$0xff] %v1414
    %1431 = vst [vmem:[#allocation2 + $0x78] sm:$0xff] %v1415
    // Predicated region
    $region30: #{tpu_custom_call.1} parent=1 // pred_check
      %p1432 = pneg %p62
    $region31: #{tpu_custom_call.1} parent=1 // pred_check_branch
      %1434 = sbr.rel (%p1432) target = $region33
    $region32: #{tpu_custom_call.1} parent=1 // pred_region
      %v1435 = vld [vmem:[#allocation2] sm:$0xff]
      %v1436 = vld [vmem:[#allocation2 + $0x8] sm:$0xff]
      %v1437 = vld [vmem:[#allocation2 + $0x10] sm:$0xff]
      %v1438 = vld [vmem:[#allocation2 + $0x18] sm:$0xff]
      %v1439 = vld [vmem:[#allocation2 + $0x20] sm:$0xff]
      %v1440 = vld [vmem:[#allocation2 + $0x28] sm:$0xff]
      %v1441 = vld [vmem:[#allocation2 + $0x30] sm:$0xff]
      %v1442 = vld [vmem:[#allocation2 + $0x38] sm:$0xff]
      %v1443 = vld [vmem:[#allocation2 + $0x40] sm:$0xff]
      %v1444 = vld [vmem:[#allocation2 + $0x48] sm:$0xff]
      %v1445 = vld [vmem:[#allocation2 + $0x50] sm:$0xff]
      %v1446 = vld [vmem:[#allocation2 + $0x58] sm:$0xff]
      %v1447 = vld [vmem:[#allocation2 + $0x60] sm:$0xff]
      %v1448 = vld [vmem:[#allocation2 + $0x68] sm:$0xff]
      %v1449 = vld [vmem:[#allocation2 + $0x70] sm:$0xff]
      %v1450 = vld [vmem:[#allocation2 + $0x78] sm:$0xff]
      %1451 = vst [vmem:[#allocation9] sm:$0xff] %v1435
      %1452 = vst [vmem:[#allocation9 + $0x8] sm:$0xff] %v1436
      %1453 = vst [vmem:[#allocation9 + $0x10] sm:$0xff] %v1437
      %1454 = vst [vmem:[#allocation9 + $0x18] sm:$0xff] %v1438
      %1455 = vst [vmem:[#allocation9 + $0x20] sm:$0xff] %v1439
      %1456 = vst [vmem:[#allocation9 + $0x28] sm:$0xff] %v1440
      %1457 = vst [vmem:[#allocation9 + $0x30] sm:$0xff] %v1441
      %1458 = vst [vmem:[#allocation9 + $0x38] sm:$0xff] %v1442
      %1459 = vst [vmem:[#allocation9 + $0x40] sm:$0xff] %v1443
      %1460 = vst [vmem:[#allocation9 + $0x48] sm:$0xff] %v1444
      %1461 = vst [vmem:[#allocation9 + $0x50] sm:$0xff] %v1445
      %1462 = vst [vmem:[#allocation9 + $0x58] sm:$0xff] %v1446
      %1463 = vst [vmem:[#allocation9 + $0x60] sm:$0xff] %v1447
      %1464 = vst [vmem:[#allocation9 + $0x68] sm:$0xff] %v1448
      %1465 = vst [vmem:[#allocation9 + $0x70] sm:$0xff] %v1449
      %1466 = vst [vmem:[#allocation9 + $0x78] sm:$0xff] %v1450
    $region33: #{tpu_custom_call.1} parent=1 // pred_fallthru
      _
    // Predicated region
    $region34: #{tpu_custom_call.1} parent=1 // pred_check
      _
    $region35: #{tpu_custom_call.1} parent=1 // pred_check_branch
      %1468 = sbr.rel (0) target = $region37
    $region36: #{tpu_custom_call.1} parent=1 // pred_region
      %1470 = vsyncadd [#allocation5], 0
      %s1471 = sshll.u32 [#allocation9], 4
      %s1472 = int_to_ptr.vmem [resolvable:$true] %s1471
      %s1473 = sshll.u32 %s3, 4
      %s1474 = int_to_ptr.hbm [resolvable:$true] %s1473
      %1479 = dma.vmem_to_hbm [thread:$0]  %s1472, 2048, %s1474, [#allocation5], 128, 128, 8
    $region37: #{tpu_custom_call.1} parent=1 // pred_fallthru
      _
    // Predicated region
    $region38: #{tpu_custom_call.1} parent=1 // pred_check
      _
    $region39: #{tpu_custom_call.1} parent=1 // pred_check_branch
      %1481 = sbr.rel (0) target = $region41
    $region40: #{tpu_custom_call.1} parent=1 // pred_region
      %1483 = dma.done [#allocation5], 2048
    $region41: #{tpu_custom_call.1} parent=1 // pred_fallthru
      _
    %1484 = vsyncpa [#allocation4], 1
    %1485 = vsyncpa [#allocation7], 1
    %1486 = vsyncpa [#allocation5], 1

</llo_original>
